<compile_context>
chip_gen: v7x
topology: tpu7x:2x2x1
jax: 0.10.0
libtpu: 0.0.40
codegen_flags: <defaults>
</compile_context>

<pallas_src>
import jax
import jax.numpy as jnp
from jax.experimental import pallas as pl
from jax.experimental.pallas import tpu as pltpu


OUT_LANES = 128  # lane-dense task-head output width; logical width sliced back


# --------------------------------------------------------------------------
# Kernels
# --------------------------------------------------------------------------
def extended_model_fast_kernel(at_ref, w1s_ref, b1_ref, w2_ref, b2_ref,
                               w3_ref, b3_ref, out_ref):
    """Fast path.

    F.softmax over a size-1 axis is identically 1.0, so
      attention_weights * audio + attention_weights * text == audio + text
    bit-for-bit; the attention branch (matmuls, tanh, exp, divide) is dead
    code and skipped.  The audio+text sum itself is folded into the first
    matmul via stacked weights:  [a|t] @ [w1; w1] == (a + t) @ w1.
    MXU inputs are bf16; accumulation and elementwise math stay f32.
    """
    h1 = jnp.maximum(
        jnp.dot(at_ref[...].astype(jnp.bfloat16), w1s_ref[...],
                preferred_element_type=jnp.float32) + b1_ref[...], 0.0)
    h2 = jnp.maximum(
        jnp.dot(h1.astype(jnp.bfloat16), w2_ref[...],
                preferred_element_type=jnp.float32) + b2_ref[...], 0.0)
    out_ref[...] = (
        jnp.dot(h2.astype(jnp.bfloat16), w3_ref[...],
                preferred_element_type=jnp.float32) + b3_ref[...])


def extended_model_attn_kernel(at_ref, w_at_ref, b_at_ref, w_ca_ref, b_ca_ref,
                               w1s_ref, b1_ref, w2_ref, b2_ref,
                               w3_ref, b3_ref, out_ref):
    """Literal MultiModalAttention path (fidelity check; identical output).

    Reads only the concatenated [audio|text] block (no duplicate DMA):
      * fused attention matmul: [a|t] @ [w_aa; w_ta] + (b_aa + b_ta)
      * (tb, A) @ (A, 1) replaced by a VPU multiply + XLU lane reduction
      * attn_w * (a + t) @ w1 == attn_w * ([a|t] @ [w1; w1]) -> the scale is
        applied after the shared stacked first-layer matmul.
    """
    at = at_ref[...]

    combined_h = jnp.tanh(
        jnp.dot(at.astype(jnp.bfloat16), w_at_ref[...],
                preferred_element_type=jnp.float32) + b_at_ref[...])   # (tb, A)

    logits = (jnp.sum(combined_h * w_ca_ref[...], axis=-1, keepdims=True)
              + b_ca_ref[...])                                          # (tb, 1)

    # softmax(dim=1) over a single column — identically 1.0, kept verbatim.
    e = jnp.exp(logits - jnp.max(logits, axis=1, keepdims=True))
    attn_w = e / jnp.sum(e, axis=1, keepdims=True)

    z1 = jnp.dot(at.astype(jnp.bfloat16), w1s_ref[...],
                 preferred_element_type=jnp.float32)
    h1 = jnp.maximum(attn_w * z1 + b1_ref[...], 0.0)
    h2 = jnp.maximum(
        jnp.dot(h1.astype(jnp.bfloat16), w2_ref[...],
                preferred_element_type=jnp.float32) + b2_ref[...], 0.0)
    out_ref[...] = (
        jnp.dot(h2.astype(jnp.bfloat16), w3_ref[...],
                preferred_element_type=jnp.float32) + b3_ref[...])


# --------------------------------------------------------------------------
# Tiling policy
# --------------------------------------------------------------------------
def _min_grid_steps():
    """v7x has 2 TensorCores/chip: keep >= 2 parallel batch tiles there so
    neither core idles.  v5e/v6e have 1 TC: the batch grid is a sequential
    loop, so prefer a single step (largest tile) to avoid per-step overhead."""
    try:
        kind = jax.devices()[0].device_kind.lower()
    except Exception:
        return 1
    return 2 if ("v7" in kind or "7x" in kind) else 1


def _pick_tile_b(batch, min_steps):
    # Largest tile (multiple of 8) that divides the batch while still giving
    # at least `min_steps` grid steps.  Block == full array is always legal.
    for t in (512, 256, 128, 64, 32, 16, 8):
        if t <= batch and batch % t == 0 and batch // t >= min_steps:
            return t
    return batch


# --------------------------------------------------------------------------
# Wrapper
# --------------------------------------------------------------------------
def extended_model_forward(audio_embed, text_embed, params,
                           keep_attention_branch=False):
    B, D = audio_embed.shape
    Dt = text_embed.shape[1]
    n_out = params["n_out"]

    # Single concatenated embedding block; the audio+text sum is folded into
    # the pre-stacked first-layer weights (see fast kernel docstring).
    at = jnp.concatenate([audio_embed, text_embed], axis=-1)   # (B, D+Dt)

    tile_b = _pick_tile_b(B, _min_grid_steps())
    grid = (max(1, B // tile_b),)

    def resident(arr):  # weights stay VMEM-resident across batch tiles
        return pl.BlockSpec(arr.shape, lambda i: (0, 0))

    batch_spec = pl.BlockSpec((tile_b, D + Dt), lambda i: (i, 0))
    out_spec = pl.BlockSpec((tile_b, OUT_LANES), lambda i: (i, 0))

    mlp_weights = (params["w1s"], params["b1"],
                   params["w2"], params["b2"],
                   params["w3p"], params["b3p"])

    if keep_attention_branch:
        kernel = extended_model_attn_kernel
        weight_args = (params["w_at"], params["b_at"],
                       params["w_ca_row"], params["b_ca"]) + mlp_weights
    else:
        kernel = extended_model_fast_kernel
        weight_args = mlp_weights

    # Advisory cost estimate so XLA can overlap surrounding ops (encoders).
    K1 = D + Dt
    H = params["w2"].shape[0]
    flops = 2 * B * (K1 * H + H * H + H * OUT_LANES)
    transcendentals = 0
    if keep_attention_branch:
        A = params["w_at"].shape[1]
        flops += 2 * B * K1 * A + 4 * B * A
        transcendentals = B * (A + 2)
    bytes_accessed = (int(at.size) * 4 + B * OUT_LANES * 4
                      + sum(int(w.size) * w.dtype.itemsize for w in weight_args))
    cost = pl.CostEstimate(flops=int(flops),
                           transcendentals=int(transcendentals),
                           bytes_accessed=int(bytes_accessed))

    out_padded = pl.pallas_call(
        kernel,
        out_shape=jax.ShapeDtypeStruct((B, OUT_LANES), jnp.float32),
        grid_spec=pltpu.PrefetchScalarGridSpec(
            num_scalar_prefetch=0,
            grid=grid,
            in_specs=[batch_spec] + [resident(w) for w in weight_args],
            out_specs=out_spec,
        ),
        compiler_params=pltpu.CompilerParams(
            dimension_semantics=("parallel",)),
        cost_estimate=cost,
    )(at, *weight_args)

    return out_padded[:, :n_out]


# --------------------------------------------------------------------------
# Parameters (all kernel-side preprocessing done ONCE here, not per call)
# --------------------------------------------------------------------------
def init_params(key, audio_embed_dim, text_embed_dim, attention_dim,
                hidden_dim, n_classes):
    ks = jax.random.split(key, 12)

    def lin(kw, kb, fan_in, fan_out):
        bound = 1.0 / jnp.sqrt(fan_in)
        w = jax.random.uniform(kw, (fan_in, fan_out), jnp.float32, -bound, bound)
        b = jax.random.uniform(kb, (1, fan_out), jnp.float32, -bound, bound)
        return w, b

    w_aa, b_aa = lin(ks[0], ks[1], audio_embed_dim, attention_dim)
    w_ta, b_ta = lin(ks[2], ks[3], text_embed_dim, attention_dim)
    w_ca, b_ca = lin(ks[4], ks[5], attention_dim, 1)
    # TODO(synk): reference __init__ declares Linear(audio_dim + text_dim, hidden)
    # but forward's `combined` (elementwise weighted sum) has dim = audio_dim; we
    # size w1 to match the forward semantics so the model is actually runnable
    # (the kernel-side stacked [w1; w1] happens to have the declared 2D shape).
    w1, b1 = lin(ks[6], ks[7], audio_embed_dim, hidden_dim)
    w2, b2 = lin(ks[8], ks[9], hidden_dim, hidden_dim)
    w3, b3 = lin(ks[10], ks[11], hidden_dim, n_classes)

    pad = OUT_LANES - n_classes
    return {
        # kernel-ready weights: MXU weights stored bf16 (f32 accumulation
        # in-kernel); biases f32; task head zero-padded lane-dense to 128.
        "w1s": jnp.concatenate([w1, w1], axis=0).astype(jnp.bfloat16),  # (2D, H)
        "b1": b1,
        "w2": w2.astype(jnp.bfloat16), "b2": b2,
        "w3p": jnp.pad(w3, ((0, 0), (0, pad))).astype(jnp.bfloat16),    # (H, 128)
        "b3p": jnp.pad(b3, ((0, 0), (0, pad))),                         # (1, 128)
        "n_out": n_classes,
        # fused attention weights (only used when keep_attention_branch=True):
        #   [audio|text] @ [w_aa; w_ta] + (b_aa + b_ta)
        "w_at": jnp.concatenate([w_aa, w_ta], axis=0).astype(jnp.bfloat16),
        "b_at": b_aa + b_ta,
        "w_ca_row": w_ca.T,   # (1, attention_dim) f32 row for the VPU reduction
        "b_ca": b_ca,         # (1, 1)
        # f32 originals for the tolerance check against the f32 reference.
        "ref": {"w1": w1, "b1": b1, "w2": w2, "b2": b2, "w3": w3, "b3": b3},
    }


def _reference_forward_f32(audio_embed, text_embed, ref):
    """Pure-f32 JAX reference of ExtendedModel.forward (eval mode)."""
    # softmax over a size-1 axis == 1.0, so combined == audio + text.
    combined = audio_embed + text_embed
    h1 = jnp.maximum(combined @ ref["w1"] + ref["b1"], 0.0)
    h2 = jnp.maximum(h1 @ ref["w2"] + ref["b2"], 0.0)
    return h2 @ ref["w3"] + ref["b3"]


# --------------------------------------------------------------------------
if __name__ == "__main__":
    key = jax.random.PRNGKey(0)
    # Batch 256: one full 256-row tile on v5e/v6e (no grid overhead, fills the
    # v6e 256-row MXU), two parallel 128-row tiles on v7x (both TensorCores).
    B = 256
    F_AUDIO = 64          # raw audio feature dim (synthetic encoder input)
    F_TEXT = 48           # raw text feature dim  (synthetic encoder input)
    D = 32                # audio_embed_dim == text_embed_dim
    ATTN = 128            # attention_dim (as in the reference)
    HIDDEN = 512          # hidden_dim    (as in the reference)
    N_CLASSES = 5

    k_in, k_enc, k_par = jax.random.split(key, 3)
    k_a, k_t = jax.random.split(k_in)
    audio = jax.random.normal(k_a, (B, F_AUDIO), jnp.float32)
    text = jax.random.normal(k_t, (B, F_TEXT), jnp.float32)

    # Synthetic stand-ins for base_model.audio_encoder / caption_encoder
    # (external pretrained HTSAT / BERT) -> (B, D) embeddings. Plain-JAX glue.
    k_ea, k_et = jax.random.split(k_enc)
    enc_a_w = jax.random.normal(k_ea, (F_AUDIO, D), jnp.float32) / jnp.sqrt(F_AUDIO)
    enc_t_w = jax.random.normal(k_et, (F_TEXT, D), jnp.float32) / jnp.sqrt(F_TEXT)
    audio_embed = audio @ enc_a_w
    text_embed = text @ enc_t_w

    params = init_params(k_par, D, D, ATTN, HIDDEN, N_CLASSES)

    # Fast (default) path: dead attention branch eliminated, sum folded into
    # the stacked first-layer matmul.
    out = jax.block_until_ready(
        extended_model_forward(audio_embed, text_embed, params))
    assert out.shape == (B, N_CLASSES) and out.dtype == jnp.float32

    # Literal (fused) attention path: must match, since softmax over a size-1
    # axis is exactly 1.0.
    out_attn = jax.block_until_ready(
        extended_model_forward(audio_embed, text_embed, params,
                               keep_attention_branch=True))
    assert jnp.allclose(out, out_attn, rtol=0.0, atol=1e-6), \
        "attention-branch output mismatch"

    # Tolerance check against the pure-f32 reference (bf16 MXU weights are not
    # bit-exact versus the f32 PyTorch module).
    ref_out = _reference_forward_f32(audio_embed, text_embed, params["ref"])
    assert jnp.allclose(out, ref_out, rtol=5e-2, atol=5e-2), \
        "f32 reference mismatch beyond bf16 tolerance"

    print("KERNEL_OK")
</pallas_src>

<mosaic_0001>
module attributes {stable_mosaic.version = 11 : i64} {
  func.func @extended_model_fast_kernel(%arg0: i32, %arg1: memref<256x64xf32, #tpu.memory_space<vmem>>, %arg2: memref<64x512xbf16, #tpu.memory_space<vmem>>, %arg3: memref<1x512xf32, #tpu.memory_space<vmem>>, %arg4: memref<512x512xbf16, #tpu.memory_space<vmem>>, %arg5: memref<1x512xf32, #tpu.memory_space<vmem>>, %arg6: memref<512x128xbf16, #tpu.memory_space<vmem>>, %arg7: memref<1x128xf32, #tpu.memory_space<vmem>>, %arg8: memref<256x128xf32, #tpu.memory_space<vmem>>) attributes {dimension_semantics = [#tpu.dimension_semantics<parallel>], iteration_bounds = array<i64: 1>, scalar_prefetch = 0 : i64, scratch_operands = 0 : i64, tpu.core_type = #tpu.core_type<tc>, window_params = [{transform_indices = @transform_0, window_bounds = array<i64: 256, 64>}, {pipeline_mode = #tpu.pipeline_mode<synchronous>, transform_indices = @transform_1, window_bounds = array<i64: 64, 512>}, {pipeline_mode = #tpu.pipeline_mode<synchronous>, transform_indices = @transform_2, window_bounds = array<i64: 1, 512>}, {pipeline_mode = #tpu.pipeline_mode<synchronous>, transform_indices = @transform_3, window_bounds = array<i64: 512, 512>}, {pipeline_mode = #tpu.pipeline_mode<synchronous>, transform_indices = @transform_4, window_bounds = array<i64: 1, 512>}, {pipeline_mode = #tpu.pipeline_mode<synchronous>, transform_indices = @transform_5, window_bounds = array<i64: 512, 128>}, {pipeline_mode = #tpu.pipeline_mode<synchronous>, transform_indices = @transform_6, window_bounds = array<i64: 1, 128>}, {transform_indices = @transform_7, window_bounds = array<i64: 256, 128>}]} {
    %c0 = arith.constant 0 : index
    %c0_0 = arith.constant 0 : index
    %0 = vector.load %arg1[%c0, %c0_0] : memref<256x64xf32, #tpu.memory_space<vmem>>, vector<256x64xf32>
    %1 = arith.truncf %0 : vector<256x64xf32> to vector<256x64xbf16>
    %c0_1 = arith.constant 0 : index
    %c0_2 = arith.constant 0 : index
    %2 = vector.load %arg2[%c0_1, %c0_2] : memref<64x512xbf16, #tpu.memory_space<vmem>>, vector<64x512xbf16>
    %cst = arith.constant dense<0.000000e+00> : vector<256x512xf32>
    %3 = tpu.matmul %1, %2, %cst {dimension_numbers = #tpu.dot_dimension_numbers<[1], [0], [0], [1], [0, 0, 1, 1], [], []>} : vector<256x64xbf16>, vector<64x512xbf16>, vector<256x512xf32> -> vector<256x512xf32>
    %c0_3 = arith.constant 0 : index
    %c0_4 = arith.constant 0 : index
    %4 = vector.load %arg3[%c0_3, %c0_4] : memref<1x512xf32, #tpu.memory_space<vmem>>, vector<1x512xf32>
    %5 = vector.broadcast %4 : vector<1x512xf32> to vector<256x512xf32>
    %6 = arith.addf %3, %5 : vector<256x512xf32>
    %cst_5 = arith.constant 0.000000e+00 : f32
    %7 = vector.broadcast %cst_5 : f32 to vector<256x512xf32>
    %8 = arith.maximumf %6, %7 : vector<256x512xf32>
    %9 = arith.truncf %8 : vector<256x512xf32> to vector<256x512xbf16>
    %c0_6 = arith.constant 0 : index
    %c0_7 = arith.constant 0 : index
    %10 = vector.load %arg4[%c0_6, %c0_7] : memref<512x512xbf16, #tpu.memory_space<vmem>>, vector<512x512xbf16>
    %cst_8 = arith.constant dense<0.000000e+00> : vector<256x512xf32>
    %11 = tpu.matmul %9, %10, %cst_8 {dimension_numbers = #tpu.dot_dimension_numbers<[1], [0], [0], [1], [0, 0, 1, 1], [], []>} : vector<256x512xbf16>, vector<512x512xbf16>, vector<256x512xf32> -> vector<256x512xf32>
    %c0_9 = arith.constant 0 : index
    %c0_10 = arith.constant 0 : index
    %12 = vector.load %arg5[%c0_9, %c0_10] : memref<1x512xf32, #tpu.memory_space<vmem>>, vector<1x512xf32>
    %13 = vector.broadcast %12 : vector<1x512xf32> to vector<256x512xf32>
    %14 = arith.addf %11, %13 : vector<256x512xf32>
    %cst_11 = arith.constant 0.000000e+00 : f32
    %15 = vector.broadcast %cst_11 : f32 to vector<256x512xf32>
    %16 = arith.maximumf %14, %15 : vector<256x512xf32>
    %17 = arith.truncf %16 : vector<256x512xf32> to vector<256x512xbf16>
    %c0_12 = arith.constant 0 : index
    %c0_13 = arith.constant 0 : index
    %18 = vector.load %arg6[%c0_12, %c0_13] : memref<512x128xbf16, #tpu.memory_space<vmem>>, vector<512x128xbf16>
    %cst_14 = arith.constant dense<0.000000e+00> : vector<256x128xf32>
    %19 = tpu.matmul %17, %18, %cst_14 {dimension_numbers = #tpu.dot_dimension_numbers<[1], [0], [0], [1], [0, 0, 1, 1], [], []>} : vector<256x512xbf16>, vector<512x128xbf16>, vector<256x128xf32> -> vector<256x128xf32>
    %c0_15 = arith.constant 0 : index
    %c0_16 = arith.constant 0 : index
    %20 = vector.load %arg7[%c0_15, %c0_16] : memref<1x128xf32, #tpu.memory_space<vmem>>, vector<1x128xf32>
    %21 = vector.broadcast %20 : vector<1x128xf32> to vector<256x128xf32>
    %22 = arith.addf %19, %21 : vector<256x128xf32>
    %c0_17 = arith.constant 0 : index
    %c0_18 = arith.constant 0 : index
    %23 = vector.load %arg8[%c0_17, %c0_18] : memref<256x128xf32, #tpu.memory_space<vmem>>, vector<256x128xf32>
    tpu.vector_store %arg8[%c0_17, %c0_18], %22 {strides = array<i32>} : memref<256x128xf32, #tpu.memory_space<vmem>>, vector<256x128xf32>,
    return
  }
  func.func @transform_0(%arg0: i32) -> (i32, i32) {
    %c0_i32 = arith.constant 0 : i32
    %c0_i32_0 = arith.constant 0 : i32
    return %arg0, %c0_i32 : i32, i32
  }
  func.func @transform_1(%arg0: i32) -> (i32, i32) {
    %c0_i32 = arith.constant 0 : i32
    %c0_i32_0 = arith.constant 0 : i32
    %c0_i32_1 = arith.constant 0 : i32
    return %c0_i32, %c0_i32_0 : i32, i32
  }
  func.func @transform_2(%arg0: i32) -> (i32, i32) {
    %c0_i32 = arith.constant 0 : i32
    %c0_i32_0 = arith.constant 0 : i32
    %c0_i32_1 = arith.constant 0 : i32
    return %c0_i32, %c0_i32_0 : i32, i32
  }
  func.func @transform_3(%arg0: i32) -> (i32, i32) {
    %c0_i32 = arith.constant 0 : i32
    %c0_i32_0 = arith.constant 0 : i32
    %c0_i32_1 = arith.constant 0 : i32
    return %c0_i32, %c0_i32_0 : i32, i32
  }
  func.func @transform_4(%arg0: i32) -> (i32, i32) {
    %c0_i32 = arith.constant 0 : i32
    %c0_i32_0 = arith.constant 0 : i32
    %c0_i32_1 = arith.constant 0 : i32
    return %c0_i32, %c0_i32_0 : i32, i32
  }
  func.func @transform_5(%arg0: i32) -> (i32, i32) {
    %c0_i32 = arith.constant 0 : i32
    %c0_i32_0 = arith.constant 0 : i32
    %c0_i32_1 = arith.constant 0 : i32
    return %c0_i32, %c0_i32_0 : i32, i32
  }
  func.func @transform_6(%arg0: i32) -> (i32, i32) {
    %c0_i32 = arith.constant 0 : i32
    %c0_i32_0 = arith.constant 0 : i32
    %c0_i32_1 = arith.constant 0 : i32
    return %c0_i32, %c0_i32_0 : i32, i32
  }
  func.func @transform_7(%arg0: i32) -> (i32, i32) {
    %c0_i32 = arith.constant 0 : i32
    %c0_i32_0 = arith.constant 0 : i32
    return %arg0, %c0_i32 : i32, i32
  }
}

</mosaic_0001>

<llo_original>
// kernel: tpu_custom_call.1
$region0: #{tpu_custom_call.1}
  #allocation0 [shape = 'u32[]', space=smem, size = 0x4, offset = 0x4, fixed_abs, tag = 'smem constant byte address 0x4 - core index']
  #allocation1 [shape = 'u32[144,128]{1,0:T(1,128)}', space=vmem, size = 0x12000, scoped, tag = 'internal scratch']
  %s0 = inlined_call_operand.vmem [shape: f32[256,64], index: 0, kind: input, shape index: {}]
  %s1 = inlined_call_operand.vmem [shape: bf16[64,512], index: 1, kind: input, shape index: {}]
  %s2 = inlined_call_operand.vmem [shape: f32[1,512], index: 2, kind: input, shape index: {}]
  %s3 = inlined_call_operand.hbm [shape: bf16[512,512], index: 3, kind: input, shape index: {}]
  %s4 = inlined_call_operand.vmem [shape: f32[1,512], index: 4, kind: input, shape index: {}]
  %s5 = inlined_call_operand.vmem [shape: bf16[512,128], index: 5, kind: input, shape index: {}]
  %s6 = inlined_call_operand.vmem [shape: f32[1,128], index: 6, kind: input, shape index: {}]
  %s7 = inlined_call_operand.hbm [shape: f32[256,128], index: 7, kind: output, shape index: {}]
  %s8 = sld [smem:[#allocation0]]
  $region42: #{tpu_custom_call.1} parent=0
    _
  %s10 = ssub.s32 1, %s8
  %s11 = scalar_select 0, %s10, %s8
  $region1: #{tpu_custom_call.1} parent=0
    #allocation2 [shape = 'u8[524288]{0}', space=vmem, size = 0x80000, scoped, tag = 'input window, operand 3, single buffered']
    #allocation3 [shape = 's32[1]{0}', space=sflag, size = 0x4, scoped, tag = 'scoped memory for tpu_custom_call.1']
    #allocation4 [shape = 's32[1]{0}', space=sflag, size = 0x4, scoped, tag = 'scoped memory for tpu_custom_call.1']
    #allocation5 [shape = 'u8[131072]{0}', space=vmem, size = 0x20000, scoped, tag = 'output window, operand 0, single buffered']
    %12 = vsyncpa [#allocation3], 0
    %13 = vsyncpa [#allocation4], 0
    // Predicated region
    $region2: #{tpu_custom_call.1} parent=1 // pred_check
      _
    $region3: #{tpu_custom_call.1} parent=1 // pred_check_branch
      %15 = sbr.rel (0) target = $region5
    $region4: #{tpu_custom_call.1} parent=1 // pred_region
      _
    $region5: #{tpu_custom_call.1} parent=1 // pred_fallthru
      _
    // Predicated region
    $region6: #{tpu_custom_call.1} parent=1 // pred_check
      _
    $region7: #{tpu_custom_call.1} parent=1 // pred_check_branch
      %17 = sbr.rel (0) target = $region9
    $region8: #{tpu_custom_call.1} parent=1 // pred_region
      _
    $region9: #{tpu_custom_call.1} parent=1 // pred_fallthru
      _
    // Predicated region
    $region10: #{tpu_custom_call.1} parent=1 // pred_check
      _
    $region11: #{tpu_custom_call.1} parent=1 // pred_check_branch
      %19 = sbr.rel (0) target = $region13
    $region12: #{tpu_custom_call.1} parent=1 // pred_region
      _
    $region13: #{tpu_custom_call.1} parent=1 // pred_fallthru
      _
    // Predicated region
    $region14: #{tpu_custom_call.1} parent=1 // pred_check
      _
    $region15: #{tpu_custom_call.1} parent=1 // pred_check_branch
      %21 = sbr.rel (0) target = $region17
    $region16: #{tpu_custom_call.1} parent=1 // pred_region
      %s23 = ssub.s32 16384, 16384
      %24 = vsyncadd [#allocation3], %s23
      %s25 = sshll.u32 [#allocation2], 4
      %s26 = int_to_ptr.vmem [resolvable:$true] %s25
      %31 = dma.hbm_to_vmem [thread:$0]  %s3, 16384, %s26, [#allocation3], 256, 256, 16
    $region17: #{tpu_custom_call.1} parent=1 // pred_fallthru
      _
    // Predicated region
    $region18: #{tpu_custom_call.1} parent=1 // pred_check
      _
    $region19: #{tpu_custom_call.1} parent=1 // pred_check_branch
      %33 = sbr.rel (0) target = $region21
    $region20: #{tpu_custom_call.1} parent=1 // pred_region
      _
    $region21: #{tpu_custom_call.1} parent=1 // pred_fallthru
      _
    // Predicated region
    $region22: #{tpu_custom_call.1} parent=1 // pred_check
      _
    $region23: #{tpu_custom_call.1} parent=1 // pred_check_branch
      %35 = sbr.rel (0) target = $region25
    $region24: #{tpu_custom_call.1} parent=1 // pred_region
      _
    $region25: #{tpu_custom_call.1} parent=1 // pred_fallthru
      _
    // Predicated region
    $region26: #{tpu_custom_call.1} parent=1 // pred_check
      _
    $region27: #{tpu_custom_call.1} parent=1 // pred_check_branch
      %37 = sbr.rel (0) target = $region29
    $region28: #{tpu_custom_call.1} parent=1 // pred_region
      _
    $region29: #{tpu_custom_call.1} parent=1 // pred_fallthru
      _
    // Predicated region
    $region30: #{tpu_custom_call.1} parent=1 // pred_check
      _
    $region31: #{tpu_custom_call.1} parent=1 // pred_check_branch
      %39 = sbr.rel (0) target = $region33
    $region32: #{tpu_custom_call.1} parent=1 // pred_region
      %40 = dma.done [#allocation3], 16384
    $region33: #{tpu_custom_call.1} parent=1 // pred_fallthru
      _
    %v42 = vld [vmem:[%s0] sm:$0xff]
    %v43 = vld [vmem:[%s0 + $0x8] sm:$0xff]
    %v44 = vld [vmem:[%s0 + $0x10] sm:$0xff]
    %v45 = vld [vmem:[%s0 + $0x18] sm:$0xff]
    %v46 = vld [vmem:[%s0 + $0x20] sm:$0xff]
    %v47 = vld [vmem:[%s0 + $0x28] sm:$0xff]
    %v48 = vld [vmem:[%s0 + $0x30] sm:$0xff]
    %v49 = vld [vmem:[%s0 + $0x38] sm:$0xff]
    %v50 = vld [vmem:[%s0 + $0x40] sm:$0xff]
    %v51 = vld [vmem:[%s0 + $0x48] sm:$0xff]
    %v52 = vld [vmem:[%s0 + $0x50] sm:$0xff]
    %v53 = vld [vmem:[%s0 + $0x58] sm:$0xff]
    %v54 = vld [vmem:[%s0 + $0x60] sm:$0xff]
    %v55 = vld [vmem:[%s0 + $0x68] sm:$0xff]
    %v56 = vld [vmem:[%s0 + $0x70] sm:$0xff]
    %v57 = vld [vmem:[%s0 + $0x78] sm:$0xff]
    %v58 = vld [vmem:[%s0 + $0x80] sm:$0xff]
    %v59 = vld [vmem:[%s0 + $0x88] sm:$0xff]
    %v60 = vld [vmem:[%s0 + $0x90] sm:$0xff]
    %v61 = vld [vmem:[%s0 + $0x98] sm:$0xff]
    %v62 = vld [vmem:[%s0 + $0xa0] sm:$0xff]
    %v63 = vld [vmem:[%s0 + $0xa8] sm:$0xff]
    %v64 = vld [vmem:[%s0 + $0xb0] sm:$0xff]
    %v65 = vld [vmem:[%s0 + $0xb8] sm:$0xff]
    %v66 = vld [vmem:[%s0 + $0xc0] sm:$0xff]
    %v67 = vld [vmem:[%s0 + $0xc8] sm:$0xff]
    %v68 = vld [vmem:[%s0 + $0xd0] sm:$0xff]
    %v69 = vld [vmem:[%s0 + $0xd8] sm:$0xff]
    %v70 = vld [vmem:[%s0 + $0xe0] sm:$0xff]
    %v71 = vld [vmem:[%s0 + $0xe8] sm:$0xff]
    %v72 = vld [vmem:[%s0 + $0xf0] sm:$0xff]
    %v73 = vld [vmem:[%s0 + $0xf8] sm:$0xff]
    %v74 = vpack.c.bf16 %v43, %v42
    %v75 = vpack.c.bf16 %v45, %v44
    %v76 = vpack.c.bf16 %v47, %v46
    %v77 = vpack.c.bf16 %v49, %v48
    %v78 = vpack.c.bf16 %v51, %v50
    %v79 = vpack.c.bf16 %v53, %v52
    %v80 = vpack.c.bf16 %v55, %v54
    %v81 = vpack.c.bf16 %v57, %v56
    %v82 = vpack.c.bf16 %v59, %v58
    %v83 = vpack.c.bf16 %v61, %v60
    %v84 = vpack.c.bf16 %v63, %v62
    %v85 = vpack.c.bf16 %v65, %v64
    %v86 = vpack.c.bf16 %v67, %v66
    %v87 = vpack.c.bf16 %v69, %v68
    %v88 = vpack.c.bf16 %v71, %v70
    %v89 = vpack.c.bf16 %v73, %v72
    %v90 = vld [vmem:[%s1] sm:$0xff]
    %v91 = vld [vmem:[%s1 + $0x8] sm:$0xff]
    %v92 = vld [vmem:[%s1 + $0x10] sm:$0xff]
    %v93 = vld [vmem:[%s1 + $0x18] sm:$0xff]
    %v94 = vld [vmem:[%s1 + $0x20] sm:$0xff]
    %v95 = vld [vmem:[%s1 + $0x28] sm:$0xff]
    %v96 = vld [vmem:[%s1 + $0x30] sm:$0xff]
    %v97 = vld [vmem:[%s1 + $0x38] sm:$0xff]
    %v98 = vld [vmem:[%s1 + $0x40] sm:$0xff]
    %v99 = vld [vmem:[%s1 + $0x48] sm:$0xff]
    %v100 = vld [vmem:[%s1 + $0x50] sm:$0xff]
    %v101 = vld [vmem:[%s1 + $0x58] sm:$0xff]
    %v102 = vld [vmem:[%s1 + $0x60] sm:$0xff]
    %v103 = vld [vmem:[%s1 + $0x68] sm:$0xff]
    %v104 = vld [vmem:[%s1 + $0x70] sm:$0xff]
    %v105 = vld [vmem:[%s1 + $0x78] sm:$0xff]
    %v106 = vld [vmem:[%s2] sm:$0xf]
    %v108 = vlaneseq
    %v109 = vshrl.u32 %v108, 7
    %v110 = vsub.s32 0, %v109
    %v111 = vrot.slane %v106, %v110
    %v112 = vlaneseq
    %v113 = vshrl.u32 %v112, 7
    %v114 = vsub.s32 1, %v113
    %v115 = vrot.slane %v106, %v114
    %v116 = vlaneseq
    %v117 = vshrl.u32 %v116, 7
    %v118 = vsub.s32 2, %v117
    %v119 = vrot.slane %v106, %v118
    %v120 = vlaneseq
    %v121 = vshrl.u32 %v120, 7
    %v122 = vsub.s32 3, %v121
    %v123 = vrot.slane %v106, %v122
    %v144 = vunpack.c.l.b16 %v90
    %v145 = vunpack.c.h.b16 %v90
    %v146 = vunpack.c.l.b16 %v91
    %v147 = vunpack.c.h.b16 %v91
    %v148 = vunpack.c.l.b16 %v92
    %v149 = vunpack.c.h.b16 %v92
    %v150 = vunpack.c.l.b16 %v93
    %v151 = vunpack.c.h.b16 %v93
    %v152 = vunpack.c.l.b16 %v94
    %v153 = vunpack.c.h.b16 %v94
    %v154 = vunpack.c.l.b16 %v95
    %v155 = vunpack.c.h.b16 %v95
    %v156 = vunpack.c.l.b16 %v96
    %v157 = vunpack.c.h.b16 %v96
    %v158 = vunpack.c.l.b16 %v97
    %v159 = vunpack.c.h.b16 %v97
    %v160 = vunpack.c.l.b16 %v98
    %v161 = vunpack.c.h.b16 %v98
    %v162 = vunpack.c.l.b16 %v99
    %v163 = vunpack.c.h.b16 %v99
    %v164 = vunpack.c.l.b16 %v100
    %v165 = vunpack.c.h.b16 %v100
    %v166 = vunpack.c.l.b16 %v101
    %v167 = vunpack.c.h.b16 %v101
    %v168 = vunpack.c.l.b16 %v102
    %v169 = vunpack.c.h.b16 %v102
    %v170 = vunpack.c.l.b16 %v103
    %v171 = vunpack.c.h.b16 %v103
    %v172 = vunpack.c.l.b16 %v104
    %v173 = vunpack.c.h.b16 %v104
    %v174 = vunpack.c.l.b16 %v105
    %v175 = vunpack.c.h.b16 %v105
    %v176 = vpack.c.b16 %v148, %v144
    %v177 = vpack.c.b16 %v149, %v145
    %v178 = vpack.c.b16 %v150, %v146
    %v179 = vpack.c.b16 %v151, %v147
    %v180 = vpack.c.b16 %v156, %v152
    %v181 = vpack.c.b16 %v157, %v153
    %v182 = vpack.c.b16 %v158, %v154
    %v183 = vpack.c.b16 %v159, %v155
    %v184 = vpack.c.b16 %v164, %v160
    %v185 = vpack.c.b16 %v165, %v161
    %v186 = vpack.c.b16 %v166, %v162
    %v187 = vpack.c.b16 %v167, %v163
    %v188 = vpack.c.b16 %v172, %v168
    %v189 = vpack.c.b16 %v173, %v169
    %v190 = vpack.c.b16 %v174, %v170
    %v191 = vpack.c.b16 %v175, %v171
    %vm208 = vcmask 523264
    %v210 = vsel %vm208, %v74, 0
    %v213 = vsel %vm208, %v75, 0
    %v216 = vsel %vm208, %v76, 0
    %v219 = vsel %vm208, %v77, 0
    %v222 = vsel %vm208, %v78, 0
    %v225 = vsel %vm208, %v79, 0
    %v228 = vsel %vm208, %v80, 0
    %v231 = vsel %vm208, %v81, 0
    %v234 = vsel %vm208, %v82, 0
    %v237 = vsel %vm208, %v83, 0
    %v240 = vsel %vm208, %v84, 0
    %v243 = vsel %vm208, %v85, 0
    %v246 = vsel %vm208, %v86, 0
    %v249 = vsel %vm208, %v87, 0
    %v252 = vsel %vm208, %v88, 0
    %v255 = vsel %vm208, %v89, 0
    %257 = vmatprep.subr.bf16.mxu0 %v177
    %258 = vmatpush1.bf16.msra.mxu0 %v176
    %259 = vmatprep.subr.bf16.mxu0 %v181
    %260 = vmatpush1.bf16.msra.mxu0 %v180
    %261 = vmatprep.subr.bf16.mxu0 %v185
    %262 = vmatpush1.bf16.msra.mxu0 %v184
    %263 = vmatprep.subr.bf16.mxu0 %v189
    %264 = vmatpush1.bf16.msra.mxu0 %v188
    %265 = vmatprep.subr.bf16.mxu0 0
    %266 = vmatpush1.bf16.msra.mxu0 0
    %267 = vmatprep.subr.bf16.mxu0 0
    %268 = vmatpush1.bf16.msra.mxu0 0
    %269 = vmatprep.subr.bf16.mxu0 0
    %270 = vmatpush1.bf16.msra.mxu0 0
    %271 = vmatprep.subr.bf16.mxu0 0
    %272 = vmatpush1.bf16.msra.mxu0 0
    %273 = vmatprep.subr.bf16.mxu0 0
    %274 = vmatpush1.bf16.msra.mxu0 0
    %275 = vmatprep.subr.bf16.mxu0 0
    %276 = vmatpush1.bf16.msra.mxu0 0
    %277 = vmatprep.subr.bf16.mxu0 0
    %278 = vmatpush1.bf16.msra.mxu0 0
    %279 = vmatprep.subr.bf16.mxu0 0
    %280 = vmatpush1.bf16.msra.mxu0 0
    %281 = vmatprep.subr.bf16.mxu0 0
    %282 = vmatpush1.bf16.msra.mxu0 0
    %283 = vmatprep.subr.bf16.mxu0 0
    %284 = vmatpush1.bf16.msra.mxu0 0
    %285 = vmatprep.subr.bf16.mxu0 0
    %286 = vmatpush1.bf16.msra.mxu0 0
    %287 = vmatprep.subr.bf16.mxu0 0
    %288 = vmatpush1.bf16.msra.mxu0 0
    %289 = vmatprep.mubr.bf16.mxu0 0
    %290 = vmatmul.mubr.bf16.gmra.mrb[0].mxu0 %v210
    %v291 = vpop.f32.mrb[0].mxu0
    %v292 = vadd.f32 %v111, %v291
    %v293 = vpop.f32.mrb[0].mxu0
    %v294 = vadd.f32 %v115, %v293
    %v295 = vpop.f32.mrb[0].mxu0
    %v296 = vadd.f32 %v111, %v295
    %v297 = vpop.f32.mrb[0].mxu0
    %v298 = vadd.f32 %v115, %v297
    %299 = vmatprep.mubr.bf16.mxu0 0
    %300 = vmatmul.mubr.bf16.gmra.mrb[0].mxu0 %v213
    %v301 = vpop.f32.mrb[0].mxu0
    %v302 = vadd.f32 %v111, %v301
    %v303 = vpop.f32.mrb[0].mxu0
    %v304 = vadd.f32 %v115, %v303
    %v305 = vpop.f32.mrb[0].mxu0
    %v306 = vadd.f32 %v111, %v305
    %v307 = vpop.f32.mrb[0].mxu0
    %v308 = vadd.f32 %v115, %v307
    %309 = vmatprep.mubr.bf16.mxu0 0
    %310 = vmatmul.mubr.bf16.gmra.mrb[0].mxu0 %v216
    %v311 = vpop.f32.mrb[0].mxu0
    %v312 = vadd.f32 %v111, %v311
    %v313 = vpop.f32.mrb[0].mxu0
    %v314 = vadd.f32 %v115, %v313
    %v315 = vpop.f32.mrb[0].mxu0
    %v316 = vadd.f32 %v111, %v315
    %v317 = vpop.f32.mrb[0].mxu0
    %v318 = vadd.f32 %v115, %v317
    %319 = vmatprep.mubr.bf16.mxu0 0
    %320 = vmatmul.mubr.bf16.gmra.mrb[0].mxu0 %v219
    %v321 = vpop.f32.mrb[0].mxu0
    %v322 = vadd.f32 %v111, %v321
    %v323 = vpop.f32.mrb[0].mxu0
    %v324 = vadd.f32 %v115, %v323
    %v325 = vpop.f32.mrb[0].mxu0
    %v326 = vadd.f32 %v111, %v325
    %v327 = vpop.f32.mrb[0].mxu0
    %v328 = vadd.f32 %v115, %v327
    %329 = vmatprep.mubr.bf16.mxu0 0
    %330 = vmatmul.mubr.bf16.gmra.mrb[0].mxu0 %v222
    %v331 = vpop.f32.mrb[0].mxu0
    %v332 = vadd.f32 %v111, %v331
    %v333 = vpop.f32.mrb[0].mxu0
    %v334 = vadd.f32 %v115, %v333
    %v335 = vpop.f32.mrb[0].mxu0
    %v336 = vadd.f32 %v111, %v335
    %v337 = vpop.f32.mrb[0].mxu0
    %v338 = vadd.f32 %v115, %v337
    %339 = vmatprep.mubr.bf16.mxu0 0
    %340 = vmatmul.mubr.bf16.gmra.mrb[0].mxu0 %v225
    %v341 = vpop.f32.mrb[0].mxu0
    %v342 = vadd.f32 %v111, %v341
    %v343 = vpop.f32.mrb[0].mxu0
    %v344 = vadd.f32 %v115, %v343
    %v345 = vpop.f32.mrb[0].mxu0
    %v346 = vadd.f32 %v111, %v345
    %v347 = vpop.f32.mrb[0].mxu0
    %v348 = vadd.f32 %v115, %v347
    %349 = vmatprep.mubr.bf16.mxu0 0
    %350 = vmatmul.mubr.bf16.gmra.mrb[0].mxu0 %v228
    %v351 = vpop.f32.mrb[0].mxu0
    %v352 = vadd.f32 %v111, %v351
    %v353 = vpop.f32.mrb[0].mxu0
    %v354 = vadd.f32 %v115, %v353
    %v355 = vpop.f32.mrb[0].mxu0
    %v356 = vadd.f32 %v111, %v355
    %v357 = vpop.f32.mrb[0].mxu0
    %v358 = vadd.f32 %v115, %v357
    %359 = vmatprep.mubr.bf16.mxu0 0
    %360 = vmatmul.mubr.bf16.gmra.mrb[0].mxu0 %v231
    %v361 = vpop.f32.mrb[0].mxu0
    %v362 = vadd.f32 %v111, %v361
    %v363 = vpop.f32.mrb[0].mxu0
    %v364 = vadd.f32 %v115, %v363
    %v365 = vpop.f32.mrb[0].mxu0
    %v366 = vadd.f32 %v111, %v365
    %v367 = vpop.f32.mrb[0].mxu0
    %v368 = vadd.f32 %v115, %v367
    %369 = vmatprep.mubr.bf16.mxu0 0
    %370 = vmatmul.mubr.bf16.gmra.mrb[0].mxu0 %v234
    %v371 = vpop.f32.mrb[0].mxu0
    %v372 = vadd.f32 %v111, %v371
    %v373 = vpop.f32.mrb[0].mxu0
    %v374 = vadd.f32 %v115, %v373
    %v375 = vpop.f32.mrb[0].mxu0
    %v376 = vadd.f32 %v111, %v375
    %v377 = vpop.f32.mrb[0].mxu0
    %v378 = vadd.f32 %v115, %v377
    %379 = vmatprep.mubr.bf16.mxu0 0
    %380 = vmatmul.mubr.bf16.gmra.mrb[0].mxu0 %v237
    %v381 = vpop.f32.mrb[0].mxu0
    %v382 = vadd.f32 %v111, %v381
    %v383 = vpop.f32.mrb[0].mxu0
    %v384 = vadd.f32 %v115, %v383
    %v385 = vpop.f32.mrb[0].mxu0
    %v386 = vadd.f32 %v111, %v385
    %v387 = vpop.f32.mrb[0].mxu0
    %v388 = vadd.f32 %v115, %v387
    %389 = vmatprep.mubr.bf16.mxu0 0
    %390 = vmatmul.mubr.bf16.gmra.mrb[0].mxu0 %v240
    %v391 = vpop.f32.mrb[0].mxu0
    %v392 = vadd.f32 %v111, %v391
    %v393 = vpop.f32.mrb[0].mxu0
    %v394 = vadd.f32 %v115, %v393
    %v395 = vpop.f32.mrb[0].mxu0
    %v396 = vadd.f32 %v111, %v395
    %v397 = vpop.f32.mrb[0].mxu0
    %v398 = vadd.f32 %v115, %v397
    %399 = vmatprep.mubr.bf16.mxu0 0
    %400 = vmatmul.mubr.bf16.gmra.mrb[0].mxu0 %v243
    %v401 = vpop.f32.mrb[0].mxu0
    %v402 = vadd.f32 %v111, %v401
    %v403 = vpop.f32.mrb[0].mxu0
    %v404 = vadd.f32 %v115, %v403
    %v405 = vpop.f32.mrb[0].mxu0
    %v406 = vadd.f32 %v111, %v405
    %v407 = vpop.f32.mrb[0].mxu0
    %v408 = vadd.f32 %v115, %v407
    %409 = vmatprep.mubr.bf16.mxu0 0
    %410 = vmatmul.mubr.bf16.gmra.mrb[0].mxu0 %v246
    %v411 = vpop.f32.mrb[0].mxu0
    %v412 = vadd.f32 %v111, %v411
    %v413 = vpop.f32.mrb[0].mxu0
    %v414 = vadd.f32 %v115, %v413
    %v415 = vpop.f32.mrb[0].mxu0
    %v416 = vadd.f32 %v111, %v415
    %v417 = vpop.f32.mrb[0].mxu0
    %v418 = vadd.f32 %v115, %v417
    %419 = vmatprep.mubr.bf16.mxu0 0
    %420 = vmatmul.mubr.bf16.gmra.mrb[0].mxu0 %v249
    %v421 = vpop.f32.mrb[0].mxu0
    %v422 = vadd.f32 %v111, %v421
    %v423 = vpop.f32.mrb[0].mxu0
    %v424 = vadd.f32 %v115, %v423
    %v425 = vpop.f32.mrb[0].mxu0
    %v426 = vadd.f32 %v111, %v425
    %v427 = vpop.f32.mrb[0].mxu0
    %v428 = vadd.f32 %v115, %v427
    %429 = vmatprep.mubr.bf16.mxu0 0
    %430 = vmatmul.mubr.bf16.gmra.mrb[0].mxu0 %v252
    %v431 = vpop.f32.mrb[0].mxu0
    %v432 = vadd.f32 %v111, %v431
    %v433 = vpop.f32.mrb[0].mxu0
    %v434 = vadd.f32 %v115, %v433
    %v435 = vpop.f32.mrb[0].mxu0
    %v436 = vadd.f32 %v111, %v435
    %v437 = vpop.f32.mrb[0].mxu0
    %v438 = vadd.f32 %v115, %v437
    %439 = vmatprep.mubr.bf16.mxu0 0
    %440 = vmatmul.mubr.bf16.gmra.mrb[0].mxu0 %v255
    %v441 = vpop.f32.mrb[0].mxu0
    %v442 = vadd.f32 %v111, %v441
    %v443 = vpop.f32.mrb[0].mxu0
    %v444 = vadd.f32 %v115, %v443
    %v445 = vpop.f32.mrb[0].mxu0
    %v446 = vadd.f32 %v111, %v445
    %v447 = vpop.f32.mrb[0].mxu0
    %v448 = vadd.f32 %v115, %v447
    %449 = vdwg.mxu0
    %450 = vmatprep.subr.bf16.mxu0 %v179
    %451 = vmatpush1.bf16.msra.mxu0 %v178
    %452 = vmatprep.subr.bf16.mxu0 %v183
    %453 = vmatpush1.bf16.msra.mxu0 %v182
    %454 = vmatprep.subr.bf16.mxu0 %v187
    %455 = vmatpush1.bf16.msra.mxu0 %v186
    %456 = vmatprep.subr.bf16.mxu0 %v191
    %457 = vmatpush1.bf16.msra.mxu0 %v190
    %458 = vmatprep.subr.bf16.mxu0 0
    %459 = vmatpush1.bf16.msra.mxu0 0
    %460 = vmatprep.subr.bf16.mxu0 0
    %461 = vmatpush1.bf16.msra.mxu0 0
    %462 = vmatprep.subr.bf16.mxu0 0
    %463 = vmatpush1.bf16.msra.mxu0 0
    %464 = vmatprep.subr.bf16.mxu0 0
    %465 = vmatpush1.bf16.msra.mxu0 0
    %466 = vmatprep.subr.bf16.mxu0 0
    %467 = vmatpush1.bf16.msra.mxu0 0
    %468 = vmatprep.subr.bf16.mxu0 0
    %469 = vmatpush1.bf16.msra.mxu0 0
    %470 = vmatprep.subr.bf16.mxu0 0
    %471 = vmatpush1.bf16.msra.mxu0 0
    %472 = vmatprep.subr.bf16.mxu0 0
    %473 = vmatpush1.bf16.msra.mxu0 0
    %474 = vmatprep.subr.bf16.mxu0 0
    %475 = vmatpush1.bf16.msra.mxu0 0
    %476 = vmatprep.subr.bf16.mxu0 0
    %477 = vmatpush1.bf16.msra.mxu0 0
    %478 = vmatprep.subr.bf16.mxu0 0
    %479 = vmatpush1.bf16.msra.mxu0 0
    %480 = vmatprep.subr.bf16.mxu0 0
    %481 = vmatpush1.bf16.msra.mxu0 0
    %482 = vmatprep.mubr.bf16.mxu0 0
    %483 = vmatmul.mubr.bf16.gmra.mrb[0].mxu0 %v210
    %v484 = vpop.f32.mrb[0].mxu0
    %v485 = vadd.f32 %v119, %v484
    %v486 = vpop.f32.mrb[0].mxu0
    %v487 = vadd.f32 %v123, %v486
    %v488 = vpop.f32.mrb[0].mxu0
    %v489 = vadd.f32 %v119, %v488
    %v490 = vpop.f32.mrb[0].mxu0
    %v491 = vadd.f32 %v123, %v490
    %492 = vmatprep.mubr.bf16.mxu0 0
    %493 = vmatmul.mubr.bf16.gmra.mrb[0].mxu0 %v213
    %v494 = vpop.f32.mrb[0].mxu0
    %v495 = vadd.f32 %v119, %v494
    %v496 = vpop.f32.mrb[0].mxu0
    %v497 = vadd.f32 %v123, %v496
    %v498 = vpop.f32.mrb[0].mxu0
    %v499 = vadd.f32 %v119, %v498
    %v500 = vpop.f32.mrb[0].mxu0
    %v501 = vadd.f32 %v123, %v500
    %502 = vmatprep.mubr.bf16.mxu0 0
    %503 = vmatmul.mubr.bf16.gmra.mrb[0].mxu0 %v216
    %v504 = vpop.f32.mrb[0].mxu0
    %v505 = vadd.f32 %v119, %v504
    %v506 = vpop.f32.mrb[0].mxu0
    %v507 = vadd.f32 %v123, %v506
    %v508 = vpop.f32.mrb[0].mxu0
    %v509 = vadd.f32 %v119, %v508
    %v510 = vpop.f32.mrb[0].mxu0
    %v511 = vadd.f32 %v123, %v510
    %512 = vmatprep.mubr.bf16.mxu0 0
    %513 = vmatmul.mubr.bf16.gmra.mrb[0].mxu0 %v219
    %v514 = vpop.f32.mrb[0].mxu0
    %v515 = vadd.f32 %v119, %v514
    %v516 = vpop.f32.mrb[0].mxu0
    %v517 = vadd.f32 %v123, %v516
    %v518 = vpop.f32.mrb[0].mxu0
    %v519 = vadd.f32 %v119, %v518
    %v520 = vpop.f32.mrb[0].mxu0
    %v521 = vadd.f32 %v123, %v520
    %522 = vmatprep.mubr.bf16.mxu0 0
    %523 = vmatmul.mubr.bf16.gmra.mrb[0].mxu0 %v222
    %v524 = vpop.f32.mrb[0].mxu0
    %v525 = vadd.f32 %v119, %v524
    %v526 = vpop.f32.mrb[0].mxu0
    %v527 = vadd.f32 %v123, %v526
    %v528 = vpop.f32.mrb[0].mxu0
    %v529 = vadd.f32 %v119, %v528
    %v530 = vpop.f32.mrb[0].mxu0
    %v531 = vadd.f32 %v123, %v530
    %532 = vmatprep.mubr.bf16.mxu0 0
    %533 = vmatmul.mubr.bf16.gmra.mrb[0].mxu0 %v225
    %v534 = vpop.f32.mrb[0].mxu0
    %v535 = vadd.f32 %v119, %v534
    %v536 = vpop.f32.mrb[0].mxu0
    %v537 = vadd.f32 %v123, %v536
    %v538 = vpop.f32.mrb[0].mxu0
    %v539 = vadd.f32 %v119, %v538
    %v540 = vpop.f32.mrb[0].mxu0
    %v541 = vadd.f32 %v123, %v540
    %542 = vmatprep.mubr.bf16.mxu0 0
    %543 = vmatmul.mubr.bf16.gmra.mrb[0].mxu0 %v228
    %v544 = vpop.f32.mrb[0].mxu0
    %v545 = vadd.f32 %v119, %v544
    %v546 = vpop.f32.mrb[0].mxu0
    %v547 = vadd.f32 %v123, %v546
    %v548 = vpop.f32.mrb[0].mxu0
    %v549 = vadd.f32 %v119, %v548
    %v550 = vpop.f32.mrb[0].mxu0
    %v551 = vadd.f32 %v123, %v550
    %552 = vmatprep.mubr.bf16.mxu0 0
    %553 = vmatmul.mubr.bf16.gmra.mrb[0].mxu0 %v231
    %v554 = vpop.f32.mrb[0].mxu0
    %v555 = vadd.f32 %v119, %v554
    %v556 = vpop.f32.mrb[0].mxu0
    %v557 = vadd.f32 %v123, %v556
    %v558 = vpop.f32.mrb[0].mxu0
    %v559 = vadd.f32 %v119, %v558
    %v560 = vpop.f32.mrb[0].mxu0
    %v561 = vadd.f32 %v123, %v560
    %562 = vmatprep.mubr.bf16.mxu0 0
    %563 = vmatmul.mubr.bf16.gmra.mrb[0].mxu0 %v234
    %v564 = vpop.f32.mrb[0].mxu0
    %v565 = vadd.f32 %v119, %v564
    %v566 = vpop.f32.mrb[0].mxu0
    %v567 = vadd.f32 %v123, %v566
    %v568 = vpop.f32.mrb[0].mxu0
    %v569 = vadd.f32 %v119, %v568
    %v570 = vpop.f32.mrb[0].mxu0
    %v571 = vadd.f32 %v123, %v570
    %572 = vmatprep.mubr.bf16.mxu0 0
    %573 = vmatmul.mubr.bf16.gmra.mrb[0].mxu0 %v237
    %v574 = vpop.f32.mrb[0].mxu0
    %v575 = vadd.f32 %v119, %v574
    %v576 = vpop.f32.mrb[0].mxu0
    %v577 = vadd.f32 %v123, %v576
    %v578 = vpop.f32.mrb[0].mxu0
    %v579 = vadd.f32 %v119, %v578
    %v580 = vpop.f32.mrb[0].mxu0
    %v581 = vadd.f32 %v123, %v580
    %582 = vmatprep.mubr.bf16.mxu0 0
    %583 = vmatmul.mubr.bf16.gmra.mrb[0].mxu0 %v240
    %v584 = vpop.f32.mrb[0].mxu0
    %v585 = vadd.f32 %v119, %v584
    %v586 = vpop.f32.mrb[0].mxu0
    %v587 = vadd.f32 %v123, %v586
    %v588 = vpop.f32.mrb[0].mxu0
    %v589 = vadd.f32 %v119, %v588
    %v590 = vpop.f32.mrb[0].mxu0
    %v591 = vadd.f32 %v123, %v590
    %592 = vmatprep.mubr.bf16.mxu0 0
    %593 = vmatmul.mubr.bf16.gmra.mrb[0].mxu0 %v243
    %v594 = vpop.f32.mrb[0].mxu0
    %v595 = vadd.f32 %v119, %v594
    %v596 = vpop.f32.mrb[0].mxu0
    %v597 = vadd.f32 %v123, %v596
    %v598 = vpop.f32.mrb[0].mxu0
    %v599 = vadd.f32 %v119, %v598
    %v600 = vpop.f32.mrb[0].mxu0
    %v601 = vadd.f32 %v123, %v600
    %602 = vmatprep.mubr.bf16.mxu0 0
    %603 = vmatmul.mubr.bf16.gmra.mrb[0].mxu0 %v246
    %v604 = vpop.f32.mrb[0].mxu0
    %v605 = vadd.f32 %v119, %v604
    %v606 = vpop.f32.mrb[0].mxu0
    %v607 = vadd.f32 %v123, %v606
    %v608 = vpop.f32.mrb[0].mxu0
    %v609 = vadd.f32 %v119, %v608
    %v610 = vpop.f32.mrb[0].mxu0
    %v611 = vadd.f32 %v123, %v610
    %612 = vmatprep.mubr.bf16.mxu0 0
    %613 = vmatmul.mubr.bf16.gmra.mrb[0].mxu0 %v249
    %v614 = vpop.f32.mrb[0].mxu0
    %v615 = vadd.f32 %v119, %v614
    %v616 = vpop.f32.mrb[0].mxu0
    %v617 = vadd.f32 %v123, %v616
    %v618 = vpop.f32.mrb[0].mxu0
    %v619 = vadd.f32 %v119, %v618
    %v620 = vpop.f32.mrb[0].mxu0
    %v621 = vadd.f32 %v123, %v620
    %622 = vmatprep.mubr.bf16.mxu0 0
    %623 = vmatmul.mubr.bf16.gmra.mrb[0].mxu0 %v252
    %v624 = vpop.f32.mrb[0].mxu0
    %v625 = vadd.f32 %v119, %v624
    %v626 = vpop.f32.mrb[0].mxu0
    %v627 = vadd.f32 %v123, %v626
    %v628 = vpop.f32.mrb[0].mxu0
    %v629 = vadd.f32 %v119, %v628
    %v630 = vpop.f32.mrb[0].mxu0
    %v631 = vadd.f32 %v123, %v630
    %632 = vmatprep.mubr.bf16.mxu0 0
    %633 = vmatmul.mubr.bf16.gmra.mrb[0].mxu0 %v255
    %v634 = vpop.f32.mrb[0].mxu0
    %v635 = vadd.f32 %v119, %v634
    %v636 = vpop.f32.mrb[0].mxu0
    %v637 = vadd.f32 %v123, %v636
    %v638 = vpop.f32.mrb[0].mxu0
    %v639 = vadd.f32 %v119, %v638
    %v640 = vpop.f32.mrb[0].mxu0
    %v641 = vadd.f32 %v123, %v640
    %642 = vdwg.mxu0
    %v643 = vmax.f32 %v292, 0.0
    %v644 = vmax.f32 %v294, 0.0
    %v645 = vmax.f32 %v485, 0.0
    %v646 = vmax.f32 %v487, 0.0
    %v647 = vmax.f32 %v296, 0.0
    %v648 = vmax.f32 %v298, 0.0
    %v649 = vmax.f32 %v489, 0.0
    %v650 = vmax.f32 %v491, 0.0
    %v651 = vmax.f32 %v302, 0.0
    %v652 = vmax.f32 %v304, 0.0
    %v653 = vmax.f32 %v495, 0.0
    %v654 = vmax.f32 %v497, 0.0
    %v655 = vmax.f32 %v306, 0.0
    %v656 = vmax.f32 %v308, 0.0
    %v657 = vmax.f32 %v499, 0.0
    %v658 = vmax.f32 %v501, 0.0
    %v659 = vmax.f32 %v312, 0.0
    %v660 = vmax.f32 %v314, 0.0
    %v661 = vmax.f32 %v505, 0.0
    %v662 = vmax.f32 %v507, 0.0
    %v663 = vmax.f32 %v316, 0.0
    %v664 = vmax.f32 %v318, 0.0
    %v665 = vmax.f32 %v509, 0.0
    %v666 = vmax.f32 %v511, 0.0
    %v667 = vmax.f32 %v322, 0.0
    %v668 = vmax.f32 %v324, 0.0
    %v669 = vmax.f32 %v515, 0.0
    %v670 = vmax.f32 %v517, 0.0
    %v671 = vmax.f32 %v326, 0.0
    %v672 = vmax.f32 %v328, 0.0
    %v673 = vmax.f32 %v519, 0.0
    %v674 = vmax.f32 %v521, 0.0
    %v675 = vmax.f32 %v332, 0.0
    %v676 = vmax.f32 %v334, 0.0
    %v677 = vmax.f32 %v525, 0.0
    %v678 = vmax.f32 %v527, 0.0
    %v679 = vmax.f32 %v336, 0.0
    %v680 = vmax.f32 %v338, 0.0
    %v681 = vmax.f32 %v529, 0.0
    %v682 = vmax.f32 %v531, 0.0
    %v683 = vmax.f32 %v342, 0.0
    %v684 = vmax.f32 %v344, 0.0
    %v685 = vmax.f32 %v535, 0.0
    %v686 = vmax.f32 %v537, 0.0
    %v687 = vmax.f32 %v346, 0.0
    %v688 = vmax.f32 %v348, 0.0
    %v689 = vmax.f32 %v539, 0.0
    %v690 = vmax.f32 %v541, 0.0
    %v691 = vmax.f32 %v352, 0.0
    %v692 = vmax.f32 %v354, 0.0
    %v693 = vmax.f32 %v545, 0.0
    %v694 = vmax.f32 %v547, 0.0
    %v695 = vmax.f32 %v356, 0.0
    %v696 = vmax.f32 %v358, 0.0
    %v697 = vmax.f32 %v549, 0.0
    %v698 = vmax.f32 %v551, 0.0
    %v699 = vmax.f32 %v362, 0.0
    %v700 = vmax.f32 %v364, 0.0
    %v701 = vmax.f32 %v555, 0.0
    %v702 = vmax.f32 %v557, 0.0
    %v703 = vmax.f32 %v366, 0.0
    %v704 = vmax.f32 %v368, 0.0
    %v705 = vmax.f32 %v559, 0.0
    %v706 = vmax.f32 %v561, 0.0
    %v707 = vmax.f32 %v372, 0.0
    %v708 = vmax.f32 %v374, 0.0
    %v709 = vmax.f32 %v565, 0.0
    %v710 = vmax.f32 %v567, 0.0
    %v711 = vmax.f32 %v376, 0.0
    %v712 = vmax.f32 %v378, 0.0
    %v713 = vmax.f32 %v569, 0.0
    %v714 = vmax.f32 %v571, 0.0
    %v715 = vmax.f32 %v382, 0.0
    %v716 = vmax.f32 %v384, 0.0
    %v717 = vmax.f32 %v575, 0.0
    %v718 = vmax.f32 %v577, 0.0
    %v719 = vmax.f32 %v386, 0.0
    %v720 = vmax.f32 %v388, 0.0
    %v721 = vmax.f32 %v579, 0.0
    %v722 = vmax.f32 %v581, 0.0
    %v723 = vmax.f32 %v392, 0.0
    %v724 = vmax.f32 %v394, 0.0
    %v725 = vmax.f32 %v585, 0.0
    %v726 = vmax.f32 %v587, 0.0
    %v727 = vmax.f32 %v396, 0.0
    %v728 = vmax.f32 %v398, 0.0
    %v729 = vmax.f32 %v589, 0.0
    %v730 = vmax.f32 %v591, 0.0
    %v731 = vmax.f32 %v402, 0.0
    %v732 = vmax.f32 %v404, 0.0
    %v733 = vmax.f32 %v595, 0.0
    %v734 = vmax.f32 %v597, 0.0
    %v735 = vmax.f32 %v406, 0.0
    %v736 = vmax.f32 %v408, 0.0
    %v737 = vmax.f32 %v599, 0.0
    %v738 = vmax.f32 %v601, 0.0
    %v739 = vmax.f32 %v412, 0.0
    %v740 = vmax.f32 %v414, 0.0
    %v741 = vmax.f32 %v605, 0.0
    %v742 = vmax.f32 %v607, 0.0
    %v743 = vmax.f32 %v416, 0.0
    %v744 = vmax.f32 %v418, 0.0
    %v745 = vmax.f32 %v609, 0.0
    %v746 = vmax.f32 %v611, 0.0
    %v747 = vmax.f32 %v422, 0.0
    %v748 = vmax.f32 %v424, 0.0
    %v749 = vmax.f32 %v615, 0.0
    %v750 = vmax.f32 %v617, 0.0
    %v751 = vmax.f32 %v426, 0.0
    %v752 = vmax.f32 %v428, 0.0
    %v753 = vmax.f32 %v619, 0.0
    %v754 = vmax.f32 %v621, 0.0
    %v755 = vmax.f32 %v432, 0.0
    %v756 = vmax.f32 %v434, 0.0
    %v757 = vmax.f32 %v625, 0.0
    %v758 = vmax.f32 %v627, 0.0
    %v759 = vmax.f32 %v436, 0.0
    %v760 = vmax.f32 %v438, 0.0
    %v761 = vmax.f32 %v629, 0.0
    %v762 = vmax.f32 %v631, 0.0
    %v763 = vmax.f32 %v442, 0.0
    %v764 = vmax.f32 %v444, 0.0
    %v765 = vmax.f32 %v635, 0.0
    %v766 = vmax.f32 %v637, 0.0
    %v767 = vmax.f32 %v446, 0.0
    %v768 = vmax.f32 %v448, 0.0
    %v769 = vmax.f32 %v639, 0.0
    %v770 = vmax.f32 %v641, 0.0
    %v771 = vpack.c.bf16 %v647, %v643
    %v772 = vpack.c.bf16 %v648, %v644
    %v773 = vpack.c.bf16 %v649, %v645
    %v774 = vpack.c.bf16 %v650, %v646
    %v775 = vpack.c.bf16 %v655, %v651
    %v776 = vpack.c.bf16 %v656, %v652
    %v777 = vpack.c.bf16 %v657, %v653
    %v778 = vpack.c.bf16 %v658, %v654
    %v779 = vpack.c.bf16 %v663, %v659
    %v780 = vpack.c.bf16 %v664, %v660
    %v781 = vpack.c.bf16 %v665, %v661
    %v782 = vpack.c.bf16 %v666, %v662
    %v783 = vpack.c.bf16 %v671, %v667
    %v784 = vpack.c.bf16 %v672, %v668
    %v785 = vpack.c.bf16 %v673, %v669
    %v786 = vpack.c.bf16 %v674, %v670
    %v787 = vpack.c.bf16 %v679, %v675
    %v788 = vpack.c.bf16 %v680, %v676
    %v789 = vpack.c.bf16 %v681, %v677
    %v790 = vpack.c.bf16 %v682, %v678
    %v791 = vpack.c.bf16 %v687, %v683
    %v792 = vpack.c.bf16 %v688, %v684
    %v793 = vpack.c.bf16 %v689, %v685
    %v794 = vpack.c.bf16 %v690, %v686
    %v795 = vpack.c.bf16 %v695, %v691
    %v796 = vpack.c.bf16 %v696, %v692
    %v797 = vpack.c.bf16 %v697, %v693
    %v798 = vpack.c.bf16 %v698, %v694
    %v799 = vpack.c.bf16 %v703, %v699
    %v800 = vpack.c.bf16 %v704, %v700
    %v801 = vpack.c.bf16 %v705, %v701
    %v802 = vpack.c.bf16 %v706, %v702
    %v803 = vpack.c.bf16 %v711, %v707
    %v804 = vpack.c.bf16 %v712, %v708
    %v805 = vpack.c.bf16 %v713, %v709
    %v806 = vpack.c.bf16 %v714, %v710
    %v807 = vpack.c.bf16 %v719, %v715
    %v808 = vpack.c.bf16 %v720, %v716
    %v809 = vpack.c.bf16 %v721, %v717
    %v810 = vpack.c.bf16 %v722, %v718
    %v811 = vpack.c.bf16 %v727, %v723
    %v812 = vpack.c.bf16 %v728, %v724
    %v813 = vpack.c.bf16 %v729, %v725
    %v814 = vpack.c.bf16 %v730, %v726
    %v815 = vpack.c.bf16 %v735, %v731
    %v816 = vpack.c.bf16 %v736, %v732
    %v817 = vpack.c.bf16 %v737, %v733
    %v818 = vpack.c.bf16 %v738, %v734
    %v819 = vpack.c.bf16 %v743, %v739
    %v820 = vpack.c.bf16 %v744, %v740
    %v821 = vpack.c.bf16 %v745, %v741
    %v822 = vpack.c.bf16 %v746, %v742
    %v823 = vpack.c.bf16 %v751, %v747
    %v824 = vpack.c.bf16 %v752, %v748
    %v825 = vpack.c.bf16 %v753, %v749
    %v826 = vpack.c.bf16 %v754, %v750
    %v827 = vpack.c.bf16 %v759, %v755
    %v828 = vpack.c.bf16 %v760, %v756
    %v829 = vpack.c.bf16 %v761, %v757
    %v830 = vpack.c.bf16 %v762, %v758
    %v831 = vpack.c.bf16 %v767, %v763
    %v832 = vpack.c.bf16 %v768, %v764
    %v833 = vpack.c.bf16 %v769, %v765
    %v834 = vpack.c.bf16 %v770, %v766
    %v835 = vld [vmem:[#allocation2] sm:$0xff]
    %v836 = vld [vmem:[#allocation2 + $0x8] sm:$0xff]
    %v837 = vld [vmem:[#allocation2 + $0x10] sm:$0xff]
    %v838 = vld [vmem:[#allocation2 + $0x18] sm:$0xff]
    %v839 = vld [vmem:[#allocation2 + $0x20] sm:$0xff]
    %v840 = vld [vmem:[#allocation2 + $0x28] sm:$0xff]
    %v841 = vld [vmem:[#allocation2 + $0x30] sm:$0xff]
    %v842 = vld [vmem:[#allocation2 + $0x38] sm:$0xff]
    %v843 = vld [vmem:[#allocation2 + $0x40] sm:$0xff]
    %v844 = vld [vmem:[#allocation2 + $0x48] sm:$0xff]
    %v845 = vld [vmem:[#allocation2 + $0x50] sm:$0xff]
    %v846 = vld [vmem:[#allocation2 + $0x58] sm:$0xff]
    %v847 = vld [vmem:[#allocation2 + $0x60] sm:$0xff]
    %v848 = vld [vmem:[#allocation2 + $0x68] sm:$0xff]
    %v849 = vld [vmem:[#allocation2 + $0x70] sm:$0xff]
    %v850 = vld [vmem:[#allocation2 + $0x78] sm:$0xff]
    %v851 = vld [vmem:[#allocation2 + $0x80] sm:$0xff]
    %v852 = vld [vmem:[#allocation2 + $0x88] sm:$0xff]
    %v853 = vld [vmem:[#allocation2 + $0x90] sm:$0xff]
    %v854 = vld [vmem:[#allocation2 + $0x98] sm:$0xff]
    %v855 = vld [vmem:[#allocation2 + $0xa0] sm:$0xff]
    %v856 = vld [vmem:[#allocation2 + $0xa8] sm:$0xff]
    %v857 = vld [vmem:[#allocation2 + $0xb0] sm:$0xff]
    %v858 = vld [vmem:[#allocation2 + $0xb8] sm:$0xff]
    %v859 = vld [vmem:[#allocation2 + $0xc0] sm:$0xff]
    %v860 = vld [vmem:[#allocation2 + $0xc8] sm:$0xff]
    %v861 = vld [vmem:[#allocation2 + $0xd0] sm:$0xff]
    %v862 = vld [vmem:[#allocation2 + $0xd8] sm:$0xff]
    %v863 = vld [vmem:[#allocation2 + $0xe0] sm:$0xff]
    %v864 = vld [vmem:[#allocation2 + $0xe8] sm:$0xff]
    %v865 = vld [vmem:[#allocation2 + $0xf0] sm:$0xff]
    %v866 = vld [vmem:[#allocation2 + $0xf8] sm:$0xff]
    %v867 = vld [vmem:[#allocation2 + $0x100] sm:$0xff]
    %v868 = vld [vmem:[#allocation2 + $0x108] sm:$0xff]
    %v869 = vld [vmem:[#allocation2 + $0x110] sm:$0xff]
    %v870 = vld [vmem:[#allocation2 + $0x118] sm:$0xff]
    %v871 = vld [vmem:[#allocation2 + $0x120] sm:$0xff]
    %v872 = vld [vmem:[#allocation2 + $0x128] sm:$0xff]
    %v873 = vld [vmem:[#allocation2 + $0x130] sm:$0xff]
    %v874 = vld [vmem:[#allocation2 + $0x138] sm:$0xff]
    %v875 = vld [vmem:[#allocation2 + $0x140] sm:$0xff]
    %v876 = vld [vmem:[#allocation2 + $0x148] sm:$0xff]
    %v877 = vld [vmem:[#allocation2 + $0x150] sm:$0xff]
    %v878 = vld [vmem:[#allocation2 + $0x158] sm:$0xff]
    %v879 = vld [vmem:[#allocation2 + $0x160] sm:$0xff]
    %v880 = vld [vmem:[#allocation2 + $0x168] sm:$0xff]
    %v881 = vld [vmem:[#allocation2 + $0x170] sm:$0xff]
    %v882 = vld [vmem:[#allocation2 + $0x178] sm:$0xff]
    %v883 = vld [vmem:[#allocation2 + $0x180] sm:$0xff]
    %v884 = vld [vmem:[#allocation2 + $0x188] sm:$0xff]
    %v885 = vld [vmem:[#allocation2 + $0x190] sm:$0xff]
    %v886 = vld [vmem:[#allocation2 + $0x198] sm:$0xff]
    %v887 = vld [vmem:[#allocation2 + $0x1a0] sm:$0xff]
    %v888 = vld [vmem:[#allocation2 + $0x1a8] sm:$0xff]
    %v889 = vld [vmem:[#allocation2 + $0x1b0] sm:$0xff]
    %v890 = vld [vmem:[#allocation2 + $0x1b8] sm:$0xff]
    %v891 = vld [vmem:[#allocation2 + $0x1c0] sm:$0xff]
    %v892 = vld [vmem:[#allocation2 + $0x1c8] sm:$0xff]
    %v893 = vld [vmem:[#allocation2 + $0x1d0] sm:$0xff]
    %v894 = vld [vmem:[#allocation2 + $0x1d8] sm:$0xff]
    %v895 = vld [vmem:[#allocation2 + $0x1e0] sm:$0xff]
    %v896 = vld [vmem:[#allocation2 + $0x1e8] sm:$0xff]
    %v897 = vld [vmem:[#allocation2 + $0x1f0] sm:$0xff]
    %v898 = vld [vmem:[#allocation2 + $0x1f8] sm:$0xff]
    %v899 = vld [vmem:[#allocation2 + $0x200] sm:$0xff]
    %v900 = vld [vmem:[#allocation2 + $0x208] sm:$0xff]
    %v901 = vld [vmem:[#allocation2 + $0x210] sm:$0xff]
    %v902 = vld [vmem:[#allocation2 + $0x218] sm:$0xff]
    %v903 = vld [vmem:[#allocation2 + $0x220] sm:$0xff]
    %v904 = vld [vmem:[#allocation2 + $0x228] sm:$0xff]
    %v905 = vld [vmem:[#allocation2 + $0x230] sm:$0xff]
    %v906 = vld [vmem:[#allocation2 + $0x238] sm:$0xff]
    %v907 = vld [vmem:[#allocation2 + $0x240] sm:$0xff]
    %v908 = vld [vmem:[#allocation2 + $0x248] sm:$0xff]
    %v909 = vld [vmem:[#allocation2 + $0x250] sm:$0xff]
    %v910 = vld [vmem:[#allocation2 + $0x258] sm:$0xff]
    %v911 = vld [vmem:[#allocation2 + $0x260] sm:$0xff]
    %v912 = vld [vmem:[#allocation2 + $0x268] sm:$0xff]
    %v913 = vld [vmem:[#allocation2 + $0x270] sm:$0xff]
    %v914 = vld [vmem:[#allocation2 + $0x278] sm:$0xff]
    %v915 = vld [vmem:[#allocation2 + $0x280] sm:$0xff]
    %v916 = vld [vmem:[#allocation2 + $0x288] sm:$0xff]
    %v917 = vld [vmem:[#allocation2 + $0x290] sm:$0xff]
    %v918 = vld [vmem:[#allocation2 + $0x298] sm:$0xff]
    %v919 = vld [vmem:[#allocation2 + $0x2a0] sm:$0xff]
    %v920 = vld [vmem:[#allocation2 + $0x2a8] sm:$0xff]
    %v921 = vld [vmem:[#allocation2 + $0x2b0] sm:$0xff]
    %v922 = vld [vmem:[#allocation2 + $0x2b8] sm:$0xff]
    %v923 = vld [vmem:[#allocation2 + $0x2c0] sm:$0xff]
    %v924 = vld [vmem:[#allocation2 + $0x2c8] sm:$0xff]
    %v925 = vld [vmem:[#allocation2 + $0x2d0] sm:$0xff]
    %v926 = vld [vmem:[#allocation2 + $0x2d8] sm:$0xff]
    %v927 = vld [vmem:[#allocation2 + $0x2e0] sm:$0xff]
    %v928 = vld [vmem:[#allocation2 + $0x2e8] sm:$0xff]
    %v929 = vld [vmem:[#allocation2 + $0x2f0] sm:$0xff]
    %v930 = vld [vmem:[#allocation2 + $0x2f8] sm:$0xff]
    %v931 = vld [vmem:[#allocation2 + $0x300] sm:$0xff]
    %v932 = vld [vmem:[#allocation2 + $0x308] sm:$0xff]
    %v933 = vld [vmem:[#allocation2 + $0x310] sm:$0xff]
    %v934 = vld [vmem:[#allocation2 + $0x318] sm:$0xff]
    %v935 = vld [vmem:[#allocation2 + $0x320] sm:$0xff]
    %v936 = vld [vmem:[#allocation2 + $0x328] sm:$0xff]
    %v937 = vld [vmem:[#allocation2 + $0x330] sm:$0xff]
    %v938 = vld [vmem:[#allocation2 + $0x338] sm:$0xff]
    %v939 = vld [vmem:[#allocation2 + $0x340] sm:$0xff]
    %v940 = vld [vmem:[#allocation2 + $0x348] sm:$0xff]
    %v941 = vld [vmem:[#allocation2 + $0x350] sm:$0xff]
    %v942 = vld [vmem:[#allocation2 + $0x358] sm:$0xff]
    %v943 = vld [vmem:[#allocation2 + $0x360] sm:$0xff]
    %v944 = vld [vmem:[#allocation2 + $0x368] sm:$0xff]
    %v945 = vld [vmem:[#allocation2 + $0x370] sm:$0xff]
    %v946 = vld [vmem:[#allocation2 + $0x378] sm:$0xff]
    %v947 = vld [vmem:[#allocation2 + $0x380] sm:$0xff]
    %v948 = vld [vmem:[#allocation2 + $0x388] sm:$0xff]
    %v949 = vld [vmem:[#allocation2 + $0x390] sm:$0xff]
    %v950 = vld [vmem:[#allocation2 + $0x398] sm:$0xff]
    %v951 = vld [vmem:[#allocation2 + $0x3a0] sm:$0xff]
    %v952 = vld [vmem:[#allocation2 + $0x3a8] sm:$0xff]
    %v953 = vld [vmem:[#allocation2 + $0x3b0] sm:$0xff]
    %v954 = vld [vmem:[#allocation2 + $0x3b8] sm:$0xff]
    %v955 = vld [vmem:[#allocation2 + $0x3c0] sm:$0xff]
    %v956 = vld [vmem:[#allocation2 + $0x3c8] sm:$0xff]
    %v957 = vld [vmem:[#allocation2 + $0x3d0] sm:$0xff]
    %v958 = vld [vmem:[#allocation2 + $0x3d8] sm:$0xff]
    %v959 = vld [vmem:[#allocation2 + $0x3e0] sm:$0xff]
    %v960 = vld [vmem:[#allocation2 + $0x3e8] sm:$0xff]
    %v961 = vld [vmem:[#allocation2 + $0x3f0] sm:$0xff]
    %v962 = vld [vmem:[#allocation2 + $0x3f8] sm:$0xff]
    %v963 = vld [vmem:[%s4] sm:$0xf]
    %v965 = vlaneseq
    %v966 = vshrl.u32 %v965, 7
    %v967 = vsub.s32 0, %v966
    %v968 = vrot.slane %v963, %v967
    %v969 = vlaneseq
    %v970 = vshrl.u32 %v969, 7
    %v971 = vsub.s32 1, %v970
    %v972 = vrot.slane %v963, %v971
    %v973 = vlaneseq
    %v974 = vshrl.u32 %v973, 7
    %v975 = vsub.s32 2, %v974
    %v976 = vrot.slane %v963, %v975
    %v977 = vlaneseq
    %v978 = vshrl.u32 %v977, 7
    %v979 = vsub.s32 3, %v978
    %v980 = vrot.slane %v963, %v979
    %v1113 = vunpack.c.l.b16 %v835
    %v1114 = vunpack.c.h.b16 %v835
    %v1115 = vunpack.c.l.b16 %v836
    %v1116 = vunpack.c.h.b16 %v836
    %v1117 = vunpack.c.l.b16 %v837
    %v1118 = vunpack.c.h.b16 %v837
    %v1119 = vunpack.c.l.b16 %v838
    %v1120 = vunpack.c.h.b16 %v838
    %v1121 = vunpack.c.l.b16 %v839
    %v1122 = vunpack.c.h.b16 %v839
    %v1123 = vunpack.c.l.b16 %v840
    %v1124 = vunpack.c.h.b16 %v840
    %v1125 = vunpack.c.l.b16 %v841
    %v1126 = vunpack.c.h.b16 %v841
    %v1127 = vunpack.c.l.b16 %v842
    %v1128 = vunpack.c.h.b16 %v842
    %v1129 = vunpack.c.l.b16 %v843
    %v1130 = vunpack.c.h.b16 %v843
    %v1131 = vunpack.c.l.b16 %v844
    %v1132 = vunpack.c.h.b16 %v844
    %v1133 = vunpack.c.l.b16 %v845
    %v1134 = vunpack.c.h.b16 %v845
    %v1135 = vunpack.c.l.b16 %v846
    %v1136 = vunpack.c.h.b16 %v846
    %v1137 = vunpack.c.l.b16 %v847
    %v1138 = vunpack.c.h.b16 %v847
    %v1139 = vunpack.c.l.b16 %v848
    %v1140 = vunpack.c.h.b16 %v848
    %v1141 = vunpack.c.l.b16 %v849
    %v1142 = vunpack.c.h.b16 %v849
    %v1143 = vunpack.c.l.b16 %v850
    %v1144 = vunpack.c.h.b16 %v850
    %v1145 = vunpack.c.l.b16 %v851
    %v1146 = vunpack.c.h.b16 %v851
    %v1147 = vunpack.c.l.b16 %v852
    %v1148 = vunpack.c.h.b16 %v852
    %v1149 = vunpack.c.l.b16 %v853
    %v1150 = vunpack.c.h.b16 %v853
    %v1151 = vunpack.c.l.b16 %v854
    %v1152 = vunpack.c.h.b16 %v854
    %v1153 = vunpack.c.l.b16 %v855
    %v1154 = vunpack.c.h.b16 %v855
    %v1155 = vunpack.c.l.b16 %v856
    %v1156 = vunpack.c.h.b16 %v856
    %v1157 = vunpack.c.l.b16 %v857
    %v1158 = vunpack.c.h.b16 %v857
    %v1159 = vunpack.c.l.b16 %v858
    %v1160 = vunpack.c.h.b16 %v858
    %v1161 = vunpack.c.l.b16 %v859
    %v1162 = vunpack.c.h.b16 %v859
    %v1163 = vunpack.c.l.b16 %v860
    %v1164 = vunpack.c.h.b16 %v860
    %v1165 = vunpack.c.l.b16 %v861
    %v1166 = vunpack.c.h.b16 %v861
    %v1167 = vunpack.c.l.b16 %v862
    %v1168 = vunpack.c.h.b16 %v862
    %v1169 = vunpack.c.l.b16 %v863
    %v1170 = vunpack.c.h.b16 %v863
    %v1171 = vunpack.c.l.b16 %v864
    %v1172 = vunpack.c.h.b16 %v864
    %v1173 = vunpack.c.l.b16 %v865
    %v1174 = vunpack.c.h.b16 %v865
    %v1175 = vunpack.c.l.b16 %v866
    %v1176 = vunpack.c.h.b16 %v866
    %v1177 = vunpack.c.l.b16 %v867
    %v1178 = vunpack.c.h.b16 %v867
    %v1179 = vunpack.c.l.b16 %v868
    %v1180 = vunpack.c.h.b16 %v868
    %v1181 = vunpack.c.l.b16 %v869
    %v1182 = vunpack.c.h.b16 %v869
    %v1183 = vunpack.c.l.b16 %v870
    %v1184 = vunpack.c.h.b16 %v870
    %v1185 = vunpack.c.l.b16 %v871
    %v1186 = vunpack.c.h.b16 %v871
    %v1187 = vunpack.c.l.b16 %v872
    %v1188 = vunpack.c.h.b16 %v872
    %v1189 = vunpack.c.l.b16 %v873
    %v1190 = vunpack.c.h.b16 %v873
    %v1191 = vunpack.c.l.b16 %v874
    %v1192 = vunpack.c.h.b16 %v874
    %v1193 = vunpack.c.l.b16 %v875
    %v1194 = vunpack.c.h.b16 %v875
    %v1195 = vunpack.c.l.b16 %v876
    %v1196 = vunpack.c.h.b16 %v876
    %v1197 = vunpack.c.l.b16 %v877
    %v1198 = vunpack.c.h.b16 %v877
    %v1199 = vunpack.c.l.b16 %v878
    %v1200 = vunpack.c.h.b16 %v878
    %v1201 = vunpack.c.l.b16 %v879
    %v1202 = vunpack.c.h.b16 %v879
    %v1203 = vunpack.c.l.b16 %v880
    %v1204 = vunpack.c.h.b16 %v880
    %v1205 = vunpack.c.l.b16 %v881
    %v1206 = vunpack.c.h.b16 %v881
    %v1207 = vunpack.c.l.b16 %v882
    %v1208 = vunpack.c.h.b16 %v882
    %v1209 = vunpack.c.l.b16 %v883
    %v1210 = vunpack.c.h.b16 %v883
    %v1211 = vunpack.c.l.b16 %v884
    %v1212 = vunpack.c.h.b16 %v884
    %v1213 = vunpack.c.l.b16 %v885
    %v1214 = vunpack.c.h.b16 %v885
    %v1215 = vunpack.c.l.b16 %v886
    %v1216 = vunpack.c.h.b16 %v886
    %v1217 = vunpack.c.l.b16 %v887
    %v1218 = vunpack.c.h.b16 %v887
    %v1219 = vunpack.c.l.b16 %v888
    %v1220 = vunpack.c.h.b16 %v888
    %v1221 = vunpack.c.l.b16 %v889
    %v1222 = vunpack.c.h.b16 %v889
    %v1223 = vunpack.c.l.b16 %v890
    %v1224 = vunpack.c.h.b16 %v890
    %v1225 = vunpack.c.l.b16 %v891
    %v1226 = vunpack.c.h.b16 %v891
    %v1227 = vunpack.c.l.b16 %v892
    %v1228 = vunpack.c.h.b16 %v892
    %v1229 = vunpack.c.l.b16 %v893
    %v1230 = vunpack.c.h.b16 %v893
    %v1231 = vunpack.c.l.b16 %v894
    %v1232 = vunpack.c.h.b16 %v894
    %v1233 = vunpack.c.l.b16 %v895
    %v1234 = vunpack.c.h.b16 %v895
    %v1235 = vunpack.c.l.b16 %v896
    %v1236 = vunpack.c.h.b16 %v896
    %v1237 = vunpack.c.l.b16 %v897
    %v1238 = vunpack.c.h.b16 %v897
    %v1239 = vunpack.c.l.b16 %v898
    %v1240 = vunpack.c.h.b16 %v898
    %v1241 = vunpack.c.l.b16 %v899
    %v1242 = vunpack.c.h.b16 %v899
    %v1243 = vunpack.c.l.b16 %v900
    %v1244 = vunpack.c.h.b16 %v900
    %v1245 = vunpack.c.l.b16 %v901
    %v1246 = vunpack.c.h.b16 %v901
    %v1247 = vunpack.c.l.b16 %v902
    %v1248 = vunpack.c.h.b16 %v902
    %v1249 = vunpack.c.l.b16 %v903
    %v1250 = vunpack.c.h.b16 %v903
    %v1251 = vunpack.c.l.b16 %v904
    %v1252 = vunpack.c.h.b16 %v904
    %v1253 = vunpack.c.l.b16 %v905
    %v1254 = vunpack.c.h.b16 %v905
    %v1255 = vunpack.c.l.b16 %v906
    %v1256 = vunpack.c.h.b16 %v906
    %v1257 = vunpack.c.l.b16 %v907
    %v1258 = vunpack.c.h.b16 %v907
    %v1259 = vunpack.c.l.b16 %v908
    %v1260 = vunpack.c.h.b16 %v908
    %v1261 = vunpack.c.l.b16 %v909
    %v1262 = vunpack.c.h.b16 %v909
    %v1263 = vunpack.c.l.b16 %v910
    %v1264 = vunpack.c.h.b16 %v910
    %v1265 = vunpack.c.l.b16 %v911
    %v1266 = vunpack.c.h.b16 %v911
    %v1267 = vunpack.c.l.b16 %v912
    %v1268 = vunpack.c.h.b16 %v912
    %v1269 = vunpack.c.l.b16 %v913
    %v1270 = vunpack.c.h.b16 %v913
    %v1271 = vunpack.c.l.b16 %v914
    %v1272 = vunpack.c.h.b16 %v914
    %v1273 = vunpack.c.l.b16 %v915
    %v1274 = vunpack.c.h.b16 %v915
    %v1275 = vunpack.c.l.b16 %v916
    %v1276 = vunpack.c.h.b16 %v916
    %v1277 = vunpack.c.l.b16 %v917
    %v1278 = vunpack.c.h.b16 %v917
    %v1279 = vunpack.c.l.b16 %v918
    %v1280 = vunpack.c.h.b16 %v918
    %v1281 = vunpack.c.l.b16 %v919
    %v1282 = vunpack.c.h.b16 %v919
    %v1283 = vunpack.c.l.b16 %v920
    %v1284 = vunpack.c.h.b16 %v920
    %v1285 = vunpack.c.l.b16 %v921
    %v1286 = vunpack.c.h.b16 %v921
    %v1287 = vunpack.c.l.b16 %v922
    %v1288 = vunpack.c.h.b16 %v922
    %v1289 = vunpack.c.l.b16 %v923
    %v1290 = vunpack.c.h.b16 %v923
    %v1291 = vunpack.c.l.b16 %v924
    %v1292 = vunpack.c.h.b16 %v924
    %v1293 = vunpack.c.l.b16 %v925
    %v1294 = vunpack.c.h.b16 %v925
    %v1295 = vunpack.c.l.b16 %v926
    %v1296 = vunpack.c.h.b16 %v926
    %v1297 = vunpack.c.l.b16 %v927
    %v1298 = vunpack.c.h.b16 %v927
    %v1299 = vunpack.c.l.b16 %v928
    %v1300 = vunpack.c.h.b16 %v928
    %v1301 = vunpack.c.l.b16 %v929
    %v1302 = vunpack.c.h.b16 %v929
    %v1303 = vunpack.c.l.b16 %v930
    %v1304 = vunpack.c.h.b16 %v930
    %v1305 = vunpack.c.l.b16 %v931
    %v1306 = vunpack.c.h.b16 %v931
    %v1307 = vunpack.c.l.b16 %v932
    %v1308 = vunpack.c.h.b16 %v932
    %v1309 = vunpack.c.l.b16 %v933
    %v1310 = vunpack.c.h.b16 %v933
    %v1311 = vunpack.c.l.b16 %v934
    %v1312 = vunpack.c.h.b16 %v934
    %v1313 = vunpack.c.l.b16 %v935
    %v1314 = vunpack.c.h.b16 %v935
    %v1315 = vunpack.c.l.b16 %v936
    %v1316 = vunpack.c.h.b16 %v936
    %v1317 = vunpack.c.l.b16 %v937
    %v1318 = vunpack.c.h.b16 %v937
    %v1319 = vunpack.c.l.b16 %v938
    %v1320 = vunpack.c.h.b16 %v938
    %v1321 = vunpack.c.l.b16 %v939
    %v1322 = vunpack.c.h.b16 %v939
    %v1323 = vunpack.c.l.b16 %v940
    %v1324 = vunpack.c.h.b16 %v940
    %v1325 = vunpack.c.l.b16 %v941
    %v1326 = vunpack.c.h.b16 %v941
    %v1327 = vunpack.c.l.b16 %v942
    %v1328 = vunpack.c.h.b16 %v942
    %v1329 = vunpack.c.l.b16 %v943
    %v1330 = vunpack.c.h.b16 %v943
    %v1331 = vunpack.c.l.b16 %v944
    %v1332 = vunpack.c.h.b16 %v944
    %v1333 = vunpack.c.l.b16 %v945
    %v1334 = vunpack.c.h.b16 %v945
    %v1335 = vunpack.c.l.b16 %v946
    %v1336 = vunpack.c.h.b16 %v946
    %v1337 = vunpack.c.l.b16 %v947
    %v1338 = vunpack.c.h.b16 %v947
    %v1339 = vunpack.c.l.b16 %v948
    %v1340 = vunpack.c.h.b16 %v948
    %v1341 = vunpack.c.l.b16 %v949
    %v1342 = vunpack.c.h.b16 %v949
    %v1343 = vunpack.c.l.b16 %v950
    %v1344 = vunpack.c.h.b16 %v950
    %v1345 = vunpack.c.l.b16 %v951
    %v1346 = vunpack.c.h.b16 %v951
    %v1347 = vunpack.c.l.b16 %v952
    %v1348 = vunpack.c.h.b16 %v952
    %v1349 = vunpack.c.l.b16 %v953
    %v1350 = vunpack.c.h.b16 %v953
    %v1351 = vunpack.c.l.b16 %v954
    %v1352 = vunpack.c.h.b16 %v954
    %v1353 = vunpack.c.l.b16 %v955
    %v1354 = vunpack.c.h.b16 %v955
    %v1355 = vunpack.c.l.b16 %v956
    %v1356 = vunpack.c.h.b16 %v956
    %v1357 = vunpack.c.l.b16 %v957
    %v1358 = vunpack.c.h.b16 %v957
    %v1359 = vunpack.c.l.b16 %v958
    %v1360 = vunpack.c.h.b16 %v958
    %v1361 = vunpack.c.l.b16 %v959
    %v1362 = vunpack.c.h.b16 %v959
    %v1363 = vunpack.c.l.b16 %v960
    %v1364 = vunpack.c.h.b16 %v960
    %v1365 = vunpack.c.l.b16 %v961
    %v1366 = vunpack.c.h.b16 %v961
    %v1367 = vunpack.c.l.b16 %v962
    %v1368 = vunpack.c.h.b16 %v962
    %v1369 = vpack.c.b16 %v1117, %v1113
    %v1370 = vpack.c.b16 %v1118, %v1114
    %v1371 = vpack.c.b16 %v1119, %v1115
    %v1372 = vpack.c.b16 %v1120, %v1116
    %v1373 = vpack.c.b16 %v1125, %v1121
    %v1374 = vpack.c.b16 %v1126, %v1122
    %v1375 = vpack.c.b16 %v1127, %v1123
    %v1376 = vpack.c.b16 %v1128, %v1124
    %v1377 = vpack.c.b16 %v1133, %v1129
    %v1378 = vpack.c.b16 %v1134, %v1130
    %v1379 = vpack.c.b16 %v1135, %v1131
    %v1380 = vpack.c.b16 %v1136, %v1132
    %v1381 = vpack.c.b16 %v1141, %v1137
    %v1382 = vpack.c.b16 %v1142, %v1138
    %v1383 = vpack.c.b16 %v1143, %v1139
    %v1384 = vpack.c.b16 %v1144, %v1140
    %v1385 = vpack.c.b16 %v1149, %v1145
    %v1386 = vpack.c.b16 %v1150, %v1146
    %v1387 = vpack.c.b16 %v1151, %v1147
    %v1388 = vpack.c.b16 %v1152, %v1148
    %v1389 = vpack.c.b16 %v1157, %v1153
    %v1390 = vpack.c.b16 %v1158, %v1154
    %v1391 = vpack.c.b16 %v1159, %v1155
    %v1392 = vpack.c.b16 %v1160, %v1156
    %v1393 = vpack.c.b16 %v1165, %v1161
    %v1394 = vpack.c.b16 %v1166, %v1162
    %v1395 = vpack.c.b16 %v1167, %v1163
    %v1396 = vpack.c.b16 %v1168, %v1164
    %v1397 = vpack.c.b16 %v1173, %v1169
    %v1398 = vpack.c.b16 %v1174, %v1170
    %v1399 = vpack.c.b16 %v1175, %v1171
    %v1400 = vpack.c.b16 %v1176, %v1172
    %v1401 = vpack.c.b16 %v1181, %v1177
    %v1402 = vpack.c.b16 %v1182, %v1178
    %v1403 = vpack.c.b16 %v1183, %v1179
    %v1404 = vpack.c.b16 %v1184, %v1180
    %v1405 = vpack.c.b16 %v1189, %v1185
    %v1406 = vpack.c.b16 %v1190, %v1186
    %v1407 = vpack.c.b16 %v1191, %v1187
    %v1408 = vpack.c.b16 %v1192, %v1188
    %v1409 = vpack.c.b16 %v1197, %v1193
    %v1410 = vpack.c.b16 %v1198, %v1194
    %v1411 = vpack.c.b16 %v1199, %v1195
    %v1412 = vpack.c.b16 %v1200, %v1196
    %v1413 = vpack.c.b16 %v1205, %v1201
    %v1414 = vpack.c.b16 %v1206, %v1202
    %v1415 = vpack.c.b16 %v1207, %v1203
    %v1416 = vpack.c.b16 %v1208, %v1204
    %v1417 = vpack.c.b16 %v1213, %v1209
    %v1418 = vpack.c.b16 %v1214, %v1210
    %v1419 = vpack.c.b16 %v1215, %v1211
    %v1420 = vpack.c.b16 %v1216, %v1212
    %v1421 = vpack.c.b16 %v1221, %v1217
    %v1422 = vpack.c.b16 %v1222, %v1218
    %v1423 = vpack.c.b16 %v1223, %v1219
    %v1424 = vpack.c.b16 %v1224, %v1220
    %v1425 = vpack.c.b16 %v1229, %v1225
    %v1426 = vpack.c.b16 %v1230, %v1226
    %v1427 = vpack.c.b16 %v1231, %v1227
    %v1428 = vpack.c.b16 %v1232, %v1228
    %v1429 = vpack.c.b16 %v1237, %v1233
    %v1430 = vpack.c.b16 %v1238, %v1234
    %v1431 = vpack.c.b16 %v1239, %v1235
    %v1432 = vpack.c.b16 %v1240, %v1236
    %v1433 = vpack.c.b16 %v1245, %v1241
    %v1434 = vpack.c.b16 %v1246, %v1242
    %v1435 = vpack.c.b16 %v1247, %v1243
    %v1436 = vpack.c.b16 %v1248, %v1244
    %v1437 = vpack.c.b16 %v1253, %v1249
    %v1438 = vpack.c.b16 %v1254, %v1250
    %v1439 = vpack.c.b16 %v1255, %v1251
    %v1440 = vpack.c.b16 %v1256, %v1252
    %v1441 = vpack.c.b16 %v1261, %v1257
    %v1442 = vpack.c.b16 %v1262, %v1258
    %v1443 = vpack.c.b16 %v1263, %v1259
    %v1444 = vpack.c.b16 %v1264, %v1260
    %v1445 = vpack.c.b16 %v1269, %v1265
    %v1446 = vpack.c.b16 %v1270, %v1266
    %v1447 = vpack.c.b16 %v1271, %v1267
    %v1448 = vpack.c.b16 %v1272, %v1268
    %v1449 = vpack.c.b16 %v1277, %v1273
    %v1450 = vpack.c.b16 %v1278, %v1274
    %v1451 = vpack.c.b16 %v1279, %v1275
    %v1452 = vpack.c.b16 %v1280, %v1276
    %v1453 = vpack.c.b16 %v1285, %v1281
    %v1454 = vpack.c.b16 %v1286, %v1282
    %v1455 = vpack.c.b16 %v1287, %v1283
    %v1456 = vpack.c.b16 %v1288, %v1284
    %v1457 = vpack.c.b16 %v1293, %v1289
    %v1458 = vpack.c.b16 %v1294, %v1290
    %v1459 = vpack.c.b16 %v1295, %v1291
    %v1460 = vpack.c.b16 %v1296, %v1292
    %v1461 = vpack.c.b16 %v1301, %v1297
    %v1462 = vpack.c.b16 %v1302, %v1298
    %v1463 = vpack.c.b16 %v1303, %v1299
    %v1464 = vpack.c.b16 %v1304, %v1300
    %v1465 = vpack.c.b16 %v1309, %v1305
    %v1466 = vpack.c.b16 %v1310, %v1306
    %v1467 = vpack.c.b16 %v1311, %v1307
    %v1468 = vpack.c.b16 %v1312, %v1308
    %v1469 = vpack.c.b16 %v1317, %v1313
    %v1470 = vpack.c.b16 %v1318, %v1314
    %v1471 = vpack.c.b16 %v1319, %v1315
    %v1472 = vpack.c.b16 %v1320, %v1316
    %v1473 = vpack.c.b16 %v1325, %v1321
    %v1474 = vpack.c.b16 %v1326, %v1322
    %v1475 = vpack.c.b16 %v1327, %v1323
    %v1476 = vpack.c.b16 %v1328, %v1324
    %v1477 = vpack.c.b16 %v1333, %v1329
    %v1478 = vpack.c.b16 %v1334, %v1330
    %v1479 = vpack.c.b16 %v1335, %v1331
    %v1480 = vpack.c.b16 %v1336, %v1332
    %v1481 = vpack.c.b16 %v1341, %v1337
    %v1482 = vpack.c.b16 %v1342, %v1338
    %v1483 = vpack.c.b16 %v1343, %v1339
    %v1484 = vpack.c.b16 %v1344, %v1340
    %v1485 = vpack.c.b16 %v1349, %v1345
    %v1486 = vpack.c.b16 %v1350, %v1346
    %v1487 = vpack.c.b16 %v1351, %v1347
    %v1488 = vpack.c.b16 %v1352, %v1348
    %v1489 = vpack.c.b16 %v1357, %v1353
    %v1490 = vpack.c.b16 %v1358, %v1354
    %v1491 = vpack.c.b16 %v1359, %v1355
    %v1492 = vpack.c.b16 %v1360, %v1356
    %v1493 = vpack.c.b16 %v1365, %v1361
    %v1494 = vpack.c.b16 %v1366, %v1362
    %v1495 = vpack.c.b16 %v1367, %v1363
    %v1496 = vpack.c.b16 %v1368, %v1364
    %1625 = vmatprep.subr.bf16.mxu0 %v1370
    %1626 = vmatpush1.bf16.msra.mxu0 %v1369
    %1627 = vmatprep.subr.bf16.mxu0 %v1374
    %1628 = vmatpush1.bf16.msra.mxu0 %v1373
    %1629 = vmatprep.subr.bf16.mxu0 %v1378
    %1630 = vmatpush1.bf16.msra.mxu0 %v1377
    %1631 = vmatprep.subr.bf16.mxu0 %v1382
    %1632 = vmatpush1.bf16.msra.mxu0 %v1381
    %1633 = vmatprep.subr.bf16.mxu0 %v1386
    %1634 = vmatpush1.bf16.msra.mxu0 %v1385
    %1635 = vmatprep.subr.bf16.mxu0 %v1390
    %1636 = vmatpush1.bf16.msra.mxu0 %v1389
    %1637 = vmatprep.subr.bf16.mxu0 %v1394
    %1638 = vmatpush1.bf16.msra.mxu0 %v1393
    %1639 = vmatprep.subr.bf16.mxu0 %v1398
    %1640 = vmatpush1.bf16.msra.mxu0 %v1397
    %1641 = vmatprep.subr.bf16.mxu0 %v1402
    %1642 = vmatpush1.bf16.msra.mxu0 %v1401
    %1643 = vmatprep.subr.bf16.mxu0 %v1406
    %1644 = vmatpush1.bf16.msra.mxu0 %v1405
    %1645 = vmatprep.subr.bf16.mxu0 %v1410
    %1646 = vmatpush1.bf16.msra.mxu0 %v1409
    %1647 = vmatprep.subr.bf16.mxu0 %v1414
    %1648 = vmatpush1.bf16.msra.mxu0 %v1413
    %1649 = vmatprep.subr.bf16.mxu0 %v1418
    %1650 = vmatpush1.bf16.msra.mxu0 %v1417
    %1651 = vmatprep.subr.bf16.mxu0 %v1422
    %1652 = vmatpush1.bf16.msra.mxu0 %v1421
    %1653 = vmatprep.subr.bf16.mxu0 %v1426
    %1654 = vmatpush1.bf16.msra.mxu0 %v1425
    %1655 = vmatprep.subr.bf16.mxu0 %v1430
    %1656 = vmatpush1.bf16.msra.mxu0 %v1429
    %1657 = vmatprep.mubr.bf16.mxu0 %v772
    %1658 = vmatmul.mubr.bf16.gmra.mrb[0].mxu0 %v771
    %v1659 = vpop.f32.mrb[0].mxu0
    %v1660 = vadd.f32 %v968, %v1659
    %v1661 = vpop.f32.mrb[0].mxu0
    %v1662 = vadd.f32 %v972, %v1661
    %v1663 = vpop.f32.mrb[0].mxu0
    %v1664 = vadd.f32 %v968, %v1663
    %v1665 = vpop.f32.mrb[0].mxu0
    %v1666 = vadd.f32 %v972, %v1665
    %1667 = vmatprep.mubr.bf16.mxu0 %v776
    %1668 = vmatmul.mubr.bf16.gmra.mrb[0].mxu0 %v775
    %v1669 = vpop.f32.mrb[0].mxu0
    %v1670 = vadd.f32 %v968, %v1669
    %v1671 = vpop.f32.mrb[0].mxu0
    %v1672 = vadd.f32 %v972, %v1671
    %v1673 = vpop.f32.mrb[0].mxu0
    %v1674 = vadd.f32 %v968, %v1673
    %v1675 = vpop.f32.mrb[0].mxu0
    %v1676 = vadd.f32 %v972, %v1675
    %1677 = vmatprep.mubr.bf16.mxu0 %v780
    %1678 = vmatmul.mubr.bf16.gmra.mrb[0].mxu0 %v779
    %v1679 = vpop.f32.mrb[0].mxu0
    %v1680 = vadd.f32 %v968, %v1679
    %v1681 = vpop.f32.mrb[0].mxu0
    %v1682 = vadd.f32 %v972, %v1681
    %v1683 = vpop.f32.mrb[0].mxu0
    %v1684 = vadd.f32 %v968, %v1683
    %v1685 = vpop.f32.mrb[0].mxu0
    %v1686 = vadd.f32 %v972, %v1685
    %1687 = vmatprep.mubr.bf16.mxu0 %v784
    %1688 = vmatmul.mubr.bf16.gmra.mrb[0].mxu0 %v783
    %v1689 = vpop.f32.mrb[0].mxu0
    %v1690 = vadd.f32 %v968, %v1689
    %v1691 = vpop.f32.mrb[0].mxu0
    %v1692 = vadd.f32 %v972, %v1691
    %v1693 = vpop.f32.mrb[0].mxu0
    %v1694 = vadd.f32 %v968, %v1693
    %v1695 = vpop.f32.mrb[0].mxu0
    %v1696 = vadd.f32 %v972, %v1695
    %1697 = vmatprep.mubr.bf16.mxu0 %v788
    %1698 = vmatmul.mubr.bf16.gmra.mrb[0].mxu0 %v787
    %v1699 = vpop.f32.mrb[0].mxu0
    %v1700 = vadd.f32 %v968, %v1699
    %v1701 = vpop.f32.mrb[0].mxu0
    %v1702 = vadd.f32 %v972, %v1701
    %v1703 = vpop.f32.mrb[0].mxu0
    %v1704 = vadd.f32 %v968, %v1703
    %v1705 = vpop.f32.mrb[0].mxu0
    %v1706 = vadd.f32 %v972, %v1705
    %1707 = vmatprep.mubr.bf16.mxu0 %v792
    %1708 = vmatmul.mubr.bf16.gmra.mrb[0].mxu0 %v791
    %v1709 = vpop.f32.mrb[0].mxu0
    %v1710 = vadd.f32 %v968, %v1709
    %v1711 = vpop.f32.mrb[0].mxu0
    %v1712 = vadd.f32 %v972, %v1711
    %v1713 = vpop.f32.mrb[0].mxu0
    %v1714 = vadd.f32 %v968, %v1713
    %v1715 = vpop.f32.mrb[0].mxu0
    %v1716 = vadd.f32 %v972, %v1715
    %1717 = vmatprep.mubr.bf16.mxu0 %v796
    %1718 = vmatmul.mubr.bf16.gmra.mrb[0].mxu0 %v795
    %v1719 = vpop.f32.mrb[0].mxu0
    %v1720 = vadd.f32 %v968, %v1719
    %v1721 = vpop.f32.mrb[0].mxu0
    %v1722 = vadd.f32 %v972, %v1721
    %v1723 = vpop.f32.mrb[0].mxu0
    %v1724 = vadd.f32 %v968, %v1723
    %v1725 = vpop.f32.mrb[0].mxu0
    %v1726 = vadd.f32 %v972, %v1725
    %1727 = vmatprep.mubr.bf16.mxu0 %v800
    %1728 = vmatmul.mubr.bf16.gmra.mrb[0].mxu0 %v799
    %v1729 = vpop.f32.mrb[0].mxu0
    %v1730 = vadd.f32 %v968, %v1729
    %v1731 = vpop.f32.mrb[0].mxu0
    %v1732 = vadd.f32 %v972, %v1731
    %v1733 = vpop.f32.mrb[0].mxu0
    %v1734 = vadd.f32 %v968, %v1733
    %v1735 = vpop.f32.mrb[0].mxu0
    %v1736 = vadd.f32 %v972, %v1735
    %1737 = vmatprep.mubr.bf16.mxu0 %v804
    %1738 = vmatmul.mubr.bf16.gmra.mrb[0].mxu0 %v803
    %v1739 = vpop.f32.mrb[0].mxu0
    %v1740 = vadd.f32 %v968, %v1739
    %v1741 = vpop.f32.mrb[0].mxu0
    %v1742 = vadd.f32 %v972, %v1741
    %v1743 = vpop.f32.mrb[0].mxu0
    %v1744 = vadd.f32 %v968, %v1743
    %v1745 = vpop.f32.mrb[0].mxu0
    %v1746 = vadd.f32 %v972, %v1745
    %1747 = vmatprep.mubr.bf16.mxu0 %v808
    %1748 = vmatmul.mubr.bf16.gmra.mrb[0].mxu0 %v807
    %v1749 = vpop.f32.mrb[0].mxu0
    %v1750 = vadd.f32 %v968, %v1749
    %v1751 = vpop.f32.mrb[0].mxu0
    %v1752 = vadd.f32 %v972, %v1751
    %v1753 = vpop.f32.mrb[0].mxu0
    %v1754 = vadd.f32 %v968, %v1753
    %v1755 = vpop.f32.mrb[0].mxu0
    %v1756 = vadd.f32 %v972, %v1755
    %1757 = vmatprep.mubr.bf16.mxu0 %v812
    %1758 = vmatmul.mubr.bf16.gmra.mrb[0].mxu0 %v811
    %v1759 = vpop.f32.mrb[0].mxu0
    %v1760 = vadd.f32 %v968, %v1759
    %v1761 = vpop.f32.mrb[0].mxu0
    %v1762 = vadd.f32 %v972, %v1761
    %v1763 = vpop.f32.mrb[0].mxu0
    %v1764 = vadd.f32 %v968, %v1763
    %v1765 = vpop.f32.mrb[0].mxu0
    %v1766 = vadd.f32 %v972, %v1765
    %1767 = vmatprep.mubr.bf16.mxu0 %v816
    %1768 = vmatmul.mubr.bf16.gmra.mrb[0].mxu0 %v815
    %v1769 = vpop.f32.mrb[0].mxu0
    %v1770 = vadd.f32 %v968, %v1769
    %v1771 = vpop.f32.mrb[0].mxu0
    %v1772 = vadd.f32 %v972, %v1771
    %v1773 = vpop.f32.mrb[0].mxu0
    %v1774 = vadd.f32 %v968, %v1773
    %v1775 = vpop.f32.mrb[0].mxu0
    %v1776 = vadd.f32 %v972, %v1775
    %1777 = vmatprep.mubr.bf16.mxu0 %v820
    %1778 = vmatmul.mubr.bf16.gmra.mrb[0].mxu0 %v819
    %v1779 = vpop.f32.mrb[0].mxu0
    %v1780 = vadd.f32 %v968, %v1779
    %v1781 = vpop.f32.mrb[0].mxu0
    %v1782 = vadd.f32 %v972, %v1781
    %v1783 = vpop.f32.mrb[0].mxu0
    %v1784 = vadd.f32 %v968, %v1783
    %v1785 = vpop.f32.mrb[0].mxu0
    %v1786 = vadd.f32 %v972, %v1785
    %1787 = vmatprep.mubr.bf16.mxu0 %v824
    %1788 = vmatmul.mubr.bf16.gmra.mrb[0].mxu0 %v823
    %v1789 = vpop.f32.mrb[0].mxu0
    %v1790 = vadd.f32 %v968, %v1789
    %v1791 = vpop.f32.mrb[0].mxu0
    %v1792 = vadd.f32 %v972, %v1791
    %v1793 = vpop.f32.mrb[0].mxu0
    %v1794 = vadd.f32 %v968, %v1793
    %v1795 = vpop.f32.mrb[0].mxu0
    %v1796 = vadd.f32 %v972, %v1795
    %1797 = vmatprep.mubr.bf16.mxu0 %v828
    %1798 = vmatmul.mubr.bf16.gmra.mrb[0].mxu0 %v827
    %v1799 = vpop.f32.mrb[0].mxu0
    %v1800 = vadd.f32 %v968, %v1799
    %v1801 = vpop.f32.mrb[0].mxu0
    %v1802 = vadd.f32 %v972, %v1801
    %v1803 = vpop.f32.mrb[0].mxu0
    %v1804 = vadd.f32 %v968, %v1803
    %v1805 = vpop.f32.mrb[0].mxu0
    %v1806 = vadd.f32 %v972, %v1805
    %1807 = vmatprep.mubr.bf16.mxu0 %v832
    %1808 = vmatmul.mubr.bf16.gmra.mrb[0].mxu0 %v831
    %v1809 = vpop.f32.mrb[0].mxu0
    %v1810 = vadd.f32 %v968, %v1809
    %v1811 = vpop.f32.mrb[0].mxu0
    %v1812 = vadd.f32 %v972, %v1811
    %v1813 = vpop.f32.mrb[0].mxu0
    %v1814 = vadd.f32 %v968, %v1813
    %v1815 = vpop.f32.mrb[0].mxu0
    %v1816 = vadd.f32 %v972, %v1815
    %1817 = vdwg.mxu0
    %1818 = vmatprep.subr.bf16.mxu0 %v1434
    %1819 = vmatpush1.bf16.msra.mxu0 %v1433
    %1820 = vmatprep.subr.bf16.mxu0 %v1438
    %1821 = vmatpush1.bf16.msra.mxu0 %v1437
    %1822 = vmatprep.subr.bf16.mxu0 %v1442
    %1823 = vmatpush1.bf16.msra.mxu0 %v1441
    %1824 = vmatprep.subr.bf16.mxu0 %v1446
    %1825 = vmatpush1.bf16.msra.mxu0 %v1445
    %1826 = vmatprep.subr.bf16.mxu0 %v1450
    %1827 = vmatpush1.bf16.msra.mxu0 %v1449
    %1828 = vmatprep.subr.bf16.mxu0 %v1454
    %1829 = vmatpush1.bf16.msra.mxu0 %v1453
    %1830 = vmatprep.subr.bf16.mxu0 %v1458
    %1831 = vmatpush1.bf16.msra.mxu0 %v1457
    %1832 = vmatprep.subr.bf16.mxu0 %v1462
    %1833 = vmatpush1.bf16.msra.mxu0 %v1461
    %1834 = vmatprep.subr.bf16.mxu0 %v1466
    %1835 = vmatpush1.bf16.msra.mxu0 %v1465
    %1836 = vmatprep.subr.bf16.mxu0 %v1470
    %1837 = vmatpush1.bf16.msra.mxu0 %v1469
    %1838 = vmatprep.subr.bf16.mxu0 %v1474
    %1839 = vmatpush1.bf16.msra.mxu0 %v1473
    %1840 = vmatprep.subr.bf16.mxu0 %v1478
    %1841 = vmatpush1.bf16.msra.mxu0 %v1477
    %1842 = vmatprep.subr.bf16.mxu0 %v1482
    %1843 = vmatpush1.bf16.msra.mxu0 %v1481
    %1844 = vmatprep.subr.bf16.mxu0 %v1486
    %1845 = vmatpush1.bf16.msra.mxu0 %v1485
    %1846 = vmatprep.subr.bf16.mxu0 %v1490
    %1847 = vmatpush1.bf16.msra.mxu0 %v1489
    %1848 = vmatprep.subr.bf16.mxu0 %v1494
    %1849 = vmatpush1.bf16.msra.mxu0 %v1493
    %1850 = vmatprep.mubr.bf16.mxu0 %v774
    %1851 = vmatmul.mubr.bf16.gmra.mrb[0].mxu0 %v773
    %v1852 = vpop.f32.mrb[0].mxu0
    %v1853 = vadd.f32 %v1660, %v1852
    %v1854 = vpop.f32.mrb[0].mxu0
    %v1855 = vadd.f32 %v1662, %v1854
    %v1856 = vpop.f32.mrb[0].mxu0
    %v1857 = vadd.f32 %v1664, %v1856
    %v1858 = vpop.f32.mrb[0].mxu0
    %v1859 = vadd.f32 %v1666, %v1858
    %1860 = vmatprep.mubr.bf16.mxu0 %v778
    %1861 = vmatmul.mubr.bf16.gmra.mrb[0].mxu0 %v777
    %v1862 = vpop.f32.mrb[0].mxu0
    %v1863 = vadd.f32 %v1670, %v1862
    %v1864 = vpop.f32.mrb[0].mxu0
    %v1865 = vadd.f32 %v1672, %v1864
    %v1866 = vpop.f32.mrb[0].mxu0
    %v1867 = vadd.f32 %v1674, %v1866
    %v1868 = vpop.f32.mrb[0].mxu0
    %v1869 = vadd.f32 %v1676, %v1868
    %1870 = vmatprep.mubr.bf16.mxu0 %v782
    %1871 = vmatmul.mubr.bf16.gmra.mrb[0].mxu0 %v781
    %v1872 = vpop.f32.mrb[0].mxu0
    %v1873 = vadd.f32 %v1680, %v1872
    %v1874 = vpop.f32.mrb[0].mxu0
    %v1875 = vadd.f32 %v1682, %v1874
    %v1876 = vpop.f32.mrb[0].mxu0
    %v1877 = vadd.f32 %v1684, %v1876
    %v1878 = vpop.f32.mrb[0].mxu0
    %v1879 = vadd.f32 %v1686, %v1878
    %1880 = vmatprep.mubr.bf16.mxu0 %v786
    %1881 = vmatmul.mubr.bf16.gmra.mrb[0].mxu0 %v785
    %v1882 = vpop.f32.mrb[0].mxu0
    %v1883 = vadd.f32 %v1690, %v1882
    %v1884 = vpop.f32.mrb[0].mxu0
    %v1885 = vadd.f32 %v1692, %v1884
    %v1886 = vpop.f32.mrb[0].mxu0
    %v1887 = vadd.f32 %v1694, %v1886
    %v1888 = vpop.f32.mrb[0].mxu0
    %v1889 = vadd.f32 %v1696, %v1888
    %1890 = vmatprep.mubr.bf16.mxu0 %v790
    %1891 = vmatmul.mubr.bf16.gmra.mrb[0].mxu0 %v789
    %v1892 = vpop.f32.mrb[0].mxu0
    %v1893 = vadd.f32 %v1700, %v1892
    %v1894 = vpop.f32.mrb[0].mxu0
    %v1895 = vadd.f32 %v1702, %v1894
    %v1896 = vpop.f32.mrb[0].mxu0
    %v1897 = vadd.f32 %v1704, %v1896
    %v1898 = vpop.f32.mrb[0].mxu0
    %v1899 = vadd.f32 %v1706, %v1898
    %1900 = vmatprep.mubr.bf16.mxu0 %v794
    %1901 = vmatmul.mubr.bf16.gmra.mrb[0].mxu0 %v793
    %v1902 = vpop.f32.mrb[0].mxu0
    %v1903 = vadd.f32 %v1710, %v1902
    %v1904 = vpop.f32.mrb[0].mxu0
    %v1905 = vadd.f32 %v1712, %v1904
    %v1906 = vpop.f32.mrb[0].mxu0
    %v1907 = vadd.f32 %v1714, %v1906
    %v1908 = vpop.f32.mrb[0].mxu0
    %v1909 = vadd.f32 %v1716, %v1908
    %1910 = vmatprep.mubr.bf16.mxu0 %v798
    %1911 = vmatmul.mubr.bf16.gmra.mrb[0].mxu0 %v797
    %v1912 = vpop.f32.mrb[0].mxu0
    %v1913 = vadd.f32 %v1720, %v1912
    %v1914 = vpop.f32.mrb[0].mxu0
    %v1915 = vadd.f32 %v1722, %v1914
    %v1916 = vpop.f32.mrb[0].mxu0
    %v1917 = vadd.f32 %v1724, %v1916
    %v1918 = vpop.f32.mrb[0].mxu0
    %v1919 = vadd.f32 %v1726, %v1918
    %1920 = vmatprep.mubr.bf16.mxu0 %v802
    %1921 = vmatmul.mubr.bf16.gmra.mrb[0].mxu0 %v801
    %v1922 = vpop.f32.mrb[0].mxu0
    %v1923 = vadd.f32 %v1730, %v1922
    %v1924 = vpop.f32.mrb[0].mxu0
    %v1925 = vadd.f32 %v1732, %v1924
    %v1926 = vpop.f32.mrb[0].mxu0
    %v1927 = vadd.f32 %v1734, %v1926
    %v1928 = vpop.f32.mrb[0].mxu0
    %v1929 = vadd.f32 %v1736, %v1928
    %1930 = vmatprep.mubr.bf16.mxu0 %v806
    %1931 = vmatmul.mubr.bf16.gmra.mrb[0].mxu0 %v805
    %v1932 = vpop.f32.mrb[0].mxu0
    %v1933 = vadd.f32 %v1740, %v1932
    %v1934 = vpop.f32.mrb[0].mxu0
    %v1935 = vadd.f32 %v1742, %v1934
    %v1936 = vpop.f32.mrb[0].mxu0
    %v1937 = vadd.f32 %v1744, %v1936
    %v1938 = vpop.f32.mrb[0].mxu0
    %v1939 = vadd.f32 %v1746, %v1938
    %1940 = vmatprep.mubr.bf16.mxu0 %v810
    %1941 = vmatmul.mubr.bf16.gmra.mrb[0].mxu0 %v809
    %v1942 = vpop.f32.mrb[0].mxu0
    %v1943 = vadd.f32 %v1750, %v1942
    %v1944 = vpop.f32.mrb[0].mxu0
    %v1945 = vadd.f32 %v1752, %v1944
    %v1946 = vpop.f32.mrb[0].mxu0
    %v1947 = vadd.f32 %v1754, %v1946
    %v1948 = vpop.f32.mrb[0].mxu0
    %v1949 = vadd.f32 %v1756, %v1948
    %1950 = vmatprep.mubr.bf16.mxu0 %v814
    %1951 = vmatmul.mubr.bf16.gmra.mrb[0].mxu0 %v813
    %v1952 = vpop.f32.mrb[0].mxu0
    %v1953 = vadd.f32 %v1760, %v1952
    %v1954 = vpop.f32.mrb[0].mxu0
    %v1955 = vadd.f32 %v1762, %v1954
    %v1956 = vpop.f32.mrb[0].mxu0
    %v1957 = vadd.f32 %v1764, %v1956
    %v1958 = vpop.f32.mrb[0].mxu0
    %v1959 = vadd.f32 %v1766, %v1958
    %1960 = vmatprep.mubr.bf16.mxu0 %v818
    %1961 = vmatmul.mubr.bf16.gmra.mrb[0].mxu0 %v817
    %v1962 = vpop.f32.mrb[0].mxu0
    %v1963 = vadd.f32 %v1770, %v1962
    %v1964 = vpop.f32.mrb[0].mxu0
    %v1965 = vadd.f32 %v1772, %v1964
    %v1966 = vpop.f32.mrb[0].mxu0
    %v1967 = vadd.f32 %v1774, %v1966
    %v1968 = vpop.f32.mrb[0].mxu0
    %v1969 = vadd.f32 %v1776, %v1968
    %1970 = vmatprep.mubr.bf16.mxu0 %v822
    %1971 = vmatmul.mubr.bf16.gmra.mrb[0].mxu0 %v821
    %v1972 = vpop.f32.mrb[0].mxu0
    %v1973 = vadd.f32 %v1780, %v1972
    %v1974 = vpop.f32.mrb[0].mxu0
    %v1975 = vadd.f32 %v1782, %v1974
    %v1976 = vpop.f32.mrb[0].mxu0
    %v1977 = vadd.f32 %v1784, %v1976
    %v1978 = vpop.f32.mrb[0].mxu0
    %v1979 = vadd.f32 %v1786, %v1978
    %1980 = vmatprep.mubr.bf16.mxu0 %v826
    %1981 = vmatmul.mubr.bf16.gmra.mrb[0].mxu0 %v825
    %v1982 = vpop.f32.mrb[0].mxu0
    %v1983 = vadd.f32 %v1790, %v1982
    %v1984 = vpop.f32.mrb[0].mxu0
    %v1985 = vadd.f32 %v1792, %v1984
    %v1986 = vpop.f32.mrb[0].mxu0
    %v1987 = vadd.f32 %v1794, %v1986
    %v1988 = vpop.f32.mrb[0].mxu0
    %v1989 = vadd.f32 %v1796, %v1988
    %1990 = vmatprep.mubr.bf16.mxu0 %v830
    %1991 = vmatmul.mubr.bf16.gmra.mrb[0].mxu0 %v829
    %v1992 = vpop.f32.mrb[0].mxu0
    %v1993 = vadd.f32 %v1800, %v1992
    %v1994 = vpop.f32.mrb[0].mxu0
    %v1995 = vadd.f32 %v1802, %v1994
    %v1996 = vpop.f32.mrb[0].mxu0
    %v1997 = vadd.f32 %v1804, %v1996
    %v1998 = vpop.f32.mrb[0].mxu0
    %v1999 = vadd.f32 %v1806, %v1998
    %2000 = vmatprep.mubr.bf16.mxu0 %v834
    %2001 = vmatmul.mubr.bf16.gmra.mrb[0].mxu0 %v833
    %v2002 = vpop.f32.mrb[0].mxu0
    %v2003 = vadd.f32 %v1810, %v2002
    %v2004 = vpop.f32.mrb[0].mxu0
    %v2005 = vadd.f32 %v1812, %v2004
    %v2006 = vpop.f32.mrb[0].mxu0
    %v2007 = vadd.f32 %v1814, %v2006
    %v2008 = vpop.f32.mrb[0].mxu0
    %v2009 = vadd.f32 %v1816, %v2008
    %2010 = vdwg.mxu0
    %2011 = vmatprep.subr.bf16.mxu0 %v1372
    %2012 = vmatpush1.bf16.msra.mxu0 %v1371
    %2013 = vmatprep.subr.bf16.mxu0 %v1376
    %2014 = vmatpush1.bf16.msra.mxu0 %v1375
    %2015 = vmatprep.subr.bf16.mxu0 %v1380
    %2016 = vmatpush1.bf16.msra.mxu0 %v1379
    %2017 = vmatprep.subr.bf16.mxu0 %v1384
    %2018 = vmatpush1.bf16.msra.mxu0 %v1383
    %2019 = vmatprep.subr.bf16.mxu0 %v1388
    %2020 = vmatpush1.bf16.msra.mxu0 %v1387
    %2021 = vmatprep.subr.bf16.mxu0 %v1392
    %2022 = vmatpush1.bf16.msra.mxu0 %v1391
    %2023 = vmatprep.subr.bf16.mxu0 %v1396
    %2024 = vmatpush1.bf16.msra.mxu0 %v1395
    %2025 = vmatprep.subr.bf16.mxu0 %v1400
    %2026 = vmatpush1.bf16.msra.mxu0 %v1399
    %2027 = vmatprep.subr.bf16.mxu0 %v1404
    %2028 = vmatpush1.bf16.msra.mxu0 %v1403
    %2029 = vmatprep.subr.bf16.mxu0 %v1408
    %2030 = vmatpush1.bf16.msra.mxu0 %v1407
    %2031 = vmatprep.subr.bf16.mxu0 %v1412
    %2032 = vmatpush1.bf16.msra.mxu0 %v1411
    %2033 = vmatprep.subr.bf16.mxu0 %v1416
    %2034 = vmatpush1.bf16.msra.mxu0 %v1415
    %2035 = vmatprep.subr.bf16.mxu0 %v1420
    %2036 = vmatpush1.bf16.msra.mxu0 %v1419
    %2037 = vmatprep.subr.bf16.mxu0 %v1424
    %2038 = vmatpush1.bf16.msra.mxu0 %v1423
    %2039 = vmatprep.subr.bf16.mxu0 %v1428
    %2040 = vmatpush1.bf16.msra.mxu0 %v1427
    %2041 = vmatprep.subr.bf16.mxu0 %v1432
    %2042 = vmatpush1.bf16.msra.mxu0 %v1431
    %2043 = vmatprep.mubr.bf16.mxu0 %v772
    %2044 = vmatmul.mubr.bf16.gmra.mrb[0].mxu0 %v771
    %v2045 = vpop.f32.mrb[0].mxu0
    %v2046 = vadd.f32 %v976, %v2045
    %v2047 = vpop.f32.mrb[0].mxu0
    %v2048 = vadd.f32 %v980, %v2047
    %v2049 = vpop.f32.mrb[0].mxu0
    %v2050 = vadd.f32 %v976, %v2049
    %v2051 = vpop.f32.mrb[0].mxu0
    %v2052 = vadd.f32 %v980, %v2051
    %2053 = vmatprep.mubr.bf16.mxu0 %v776
    %2054 = vmatmul.mubr.bf16.gmra.mrb[0].mxu0 %v775
    %v2055 = vpop.f32.mrb[0].mxu0
    %v2056 = vadd.f32 %v976, %v2055
    %v2057 = vpop.f32.mrb[0].mxu0
    %v2058 = vadd.f32 %v980, %v2057
    %v2059 = vpop.f32.mrb[0].mxu0
    %v2060 = vadd.f32 %v976, %v2059
    %v2061 = vpop.f32.mrb[0].mxu0
    %v2062 = vadd.f32 %v980, %v2061
    %2063 = vmatprep.mubr.bf16.mxu0 %v780
    %2064 = vmatmul.mubr.bf16.gmra.mrb[0].mxu0 %v779
    %v2065 = vpop.f32.mrb[0].mxu0
    %v2066 = vadd.f32 %v976, %v2065
    %v2067 = vpop.f32.mrb[0].mxu0
    %v2068 = vadd.f32 %v980, %v2067
    %v2069 = vpop.f32.mrb[0].mxu0
    %v2070 = vadd.f32 %v976, %v2069
    %v2071 = vpop.f32.mrb[0].mxu0
    %v2072 = vadd.f32 %v980, %v2071
    %2073 = vmatprep.mubr.bf16.mxu0 %v784
    %2074 = vmatmul.mubr.bf16.gmra.mrb[0].mxu0 %v783
    %v2075 = vpop.f32.mrb[0].mxu0
    %v2076 = vadd.f32 %v976, %v2075
    %v2077 = vpop.f32.mrb[0].mxu0
    %v2078 = vadd.f32 %v980, %v2077
    %v2079 = vpop.f32.mrb[0].mxu0
    %v2080 = vadd.f32 %v976, %v2079
    %v2081 = vpop.f32.mrb[0].mxu0
    %v2082 = vadd.f32 %v980, %v2081
    %2083 = vmatprep.mubr.bf16.mxu0 %v788
    %2084 = vmatmul.mubr.bf16.gmra.mrb[0].mxu0 %v787
    %v2085 = vpop.f32.mrb[0].mxu0
    %v2086 = vadd.f32 %v976, %v2085
    %v2087 = vpop.f32.mrb[0].mxu0
    %v2088 = vadd.f32 %v980, %v2087
    %v2089 = vpop.f32.mrb[0].mxu0
    %v2090 = vadd.f32 %v976, %v2089
    %v2091 = vpop.f32.mrb[0].mxu0
    %v2092 = vadd.f32 %v980, %v2091
    %2093 = vmatprep.mubr.bf16.mxu0 %v792
    %2094 = vmatmul.mubr.bf16.gmra.mrb[0].mxu0 %v791
    %v2095 = vpop.f32.mrb[0].mxu0
    %v2096 = vadd.f32 %v976, %v2095
    %v2097 = vpop.f32.mrb[0].mxu0
    %v2098 = vadd.f32 %v980, %v2097
    %v2099 = vpop.f32.mrb[0].mxu0
    %v2100 = vadd.f32 %v976, %v2099
    %v2101 = vpop.f32.mrb[0].mxu0
    %v2102 = vadd.f32 %v980, %v2101
    %2103 = vmatprep.mubr.bf16.mxu0 %v796
    %2104 = vmatmul.mubr.bf16.gmra.mrb[0].mxu0 %v795
    %v2105 = vpop.f32.mrb[0].mxu0
    %v2106 = vadd.f32 %v976, %v2105
    %v2107 = vpop.f32.mrb[0].mxu0
    %v2108 = vadd.f32 %v980, %v2107
    %v2109 = vpop.f32.mrb[0].mxu0
    %v2110 = vadd.f32 %v976, %v2109
    %v2111 = vpop.f32.mrb[0].mxu0
    %v2112 = vadd.f32 %v980, %v2111
    %2113 = vmatprep.mubr.bf16.mxu0 %v800
    %2114 = vmatmul.mubr.bf16.gmra.mrb[0].mxu0 %v799
    %v2115 = vpop.f32.mrb[0].mxu0
    %v2116 = vadd.f32 %v976, %v2115
    %v2117 = vpop.f32.mrb[0].mxu0
    %v2118 = vadd.f32 %v980, %v2117
    %v2119 = vpop.f32.mrb[0].mxu0
    %v2120 = vadd.f32 %v976, %v2119
    %v2121 = vpop.f32.mrb[0].mxu0
    %v2122 = vadd.f32 %v980, %v2121
    %2123 = vmatprep.mubr.bf16.mxu0 %v804
    %2124 = vmatmul.mubr.bf16.gmra.mrb[0].mxu0 %v803
    %v2125 = vpop.f32.mrb[0].mxu0
    %v2126 = vadd.f32 %v976, %v2125
    %v2127 = vpop.f32.mrb[0].mxu0
    %v2128 = vadd.f32 %v980, %v2127
    %v2129 = vpop.f32.mrb[0].mxu0
    %v2130 = vadd.f32 %v976, %v2129
    %v2131 = vpop.f32.mrb[0].mxu0
    %v2132 = vadd.f32 %v980, %v2131
    %2133 = vmatprep.mubr.bf16.mxu0 %v808
    %2134 = vmatmul.mubr.bf16.gmra.mrb[0].mxu0 %v807
    %v2135 = vpop.f32.mrb[0].mxu0
    %v2136 = vadd.f32 %v976, %v2135
    %v2137 = vpop.f32.mrb[0].mxu0
    %v2138 = vadd.f32 %v980, %v2137
    %v2139 = vpop.f32.mrb[0].mxu0
    %v2140 = vadd.f32 %v976, %v2139
    %v2141 = vpop.f32.mrb[0].mxu0
    %v2142 = vadd.f32 %v980, %v2141
    %2143 = vmatprep.mubr.bf16.mxu0 %v812
    %2144 = vmatmul.mubr.bf16.gmra.mrb[0].mxu0 %v811
    %v2145 = vpop.f32.mrb[0].mxu0
    %v2146 = vadd.f32 %v976, %v2145
    %v2147 = vpop.f32.mrb[0].mxu0
    %v2148 = vadd.f32 %v980, %v2147
    %v2149 = vpop.f32.mrb[0].mxu0
    %v2150 = vadd.f32 %v976, %v2149
    %v2151 = vpop.f32.mrb[0].mxu0
    %v2152 = vadd.f32 %v980, %v2151
    %2153 = vmatprep.mubr.bf16.mxu0 %v816
    %2154 = vmatmul.mubr.bf16.gmra.mrb[0].mxu0 %v815
    %v2155 = vpop.f32.mrb[0].mxu0
    %v2156 = vadd.f32 %v976, %v2155
    %v2157 = vpop.f32.mrb[0].mxu0
    %v2158 = vadd.f32 %v980, %v2157
    %v2159 = vpop.f32.mrb[0].mxu0
    %v2160 = vadd.f32 %v976, %v2159
    %v2161 = vpop.f32.mrb[0].mxu0
    %v2162 = vadd.f32 %v980, %v2161
    %2163 = vmatprep.mubr.bf16.mxu0 %v820
    %2164 = vmatmul.mubr.bf16.gmra.mrb[0].mxu0 %v819
    %v2165 = vpop.f32.mrb[0].mxu0
    %v2166 = vadd.f32 %v976, %v2165
    %v2167 = vpop.f32.mrb[0].mxu0
    %v2168 = vadd.f32 %v980, %v2167
    %v2169 = vpop.f32.mrb[0].mxu0
    %v2170 = vadd.f32 %v976, %v2169
    %v2171 = vpop.f32.mrb[0].mxu0
    %v2172 = vadd.f32 %v980, %v2171
    %2173 = vmatprep.mubr.bf16.mxu0 %v824
    %2174 = vmatmul.mubr.bf16.gmra.mrb[0].mxu0 %v823
    %v2175 = vpop.f32.mrb[0].mxu0
    %v2176 = vadd.f32 %v976, %v2175
    %v2177 = vpop.f32.mrb[0].mxu0
    %v2178 = vadd.f32 %v980, %v2177
    %v2179 = vpop.f32.mrb[0].mxu0
    %v2180 = vadd.f32 %v976, %v2179
    %v2181 = vpop.f32.mrb[0].mxu0
    %v2182 = vadd.f32 %v980, %v2181
    %2183 = vmatprep.mubr.bf16.mxu0 %v828
    %2184 = vmatmul.mubr.bf16.gmra.mrb[0].mxu0 %v827
    %v2185 = vpop.f32.mrb[0].mxu0
    %v2186 = vadd.f32 %v976, %v2185
    %v2187 = vpop.f32.mrb[0].mxu0
    %v2188 = vadd.f32 %v980, %v2187
    %v2189 = vpop.f32.mrb[0].mxu0
    %v2190 = vadd.f32 %v976, %v2189
    %v2191 = vpop.f32.mrb[0].mxu0
    %v2192 = vadd.f32 %v980, %v2191
    %2193 = vmatprep.mubr.bf16.mxu0 %v832
    %2194 = vmatmul.mubr.bf16.gmra.mrb[0].mxu0 %v831
    %v2195 = vpop.f32.mrb[0].mxu0
    %v2196 = vadd.f32 %v976, %v2195
    %v2197 = vpop.f32.mrb[0].mxu0
    %v2198 = vadd.f32 %v980, %v2197
    %v2199 = vpop.f32.mrb[0].mxu0
    %v2200 = vadd.f32 %v976, %v2199
    %v2201 = vpop.f32.mrb[0].mxu0
    %v2202 = vadd.f32 %v980, %v2201
    %2203 = vdwg.mxu0
    %2204 = vmatprep.subr.bf16.mxu0 %v1436
    %2205 = vmatpush1.bf16.msra.mxu0 %v1435
    %2206 = vmatprep.subr.bf16.mxu0 %v1440
    %2207 = vmatpush1.bf16.msra.mxu0 %v1439
    %2208 = vmatprep.subr.bf16.mxu0 %v1444
    %2209 = vmatpush1.bf16.msra.mxu0 %v1443
    %2210 = vmatprep.subr.bf16.mxu0 %v1448
    %2211 = vmatpush1.bf16.msra.mxu0 %v1447
    %2212 = vmatprep.subr.bf16.mxu0 %v1452
    %2213 = vmatpush1.bf16.msra.mxu0 %v1451
    %2214 = vmatprep.subr.bf16.mxu0 %v1456
    %2215 = vmatpush1.bf16.msra.mxu0 %v1455
    %2216 = vmatprep.subr.bf16.mxu0 %v1460
    %2217 = vmatpush1.bf16.msra.mxu0 %v1459
    %2218 = vmatprep.subr.bf16.mxu0 %v1464
    %2219 = vmatpush1.bf16.msra.mxu0 %v1463
    %2220 = vmatprep.subr.bf16.mxu0 %v1468
    %2221 = vmatpush1.bf16.msra.mxu0 %v1467
    %2222 = vmatprep.subr.bf16.mxu0 %v1472
    %2223 = vmatpush1.bf16.msra.mxu0 %v1471
    %2224 = vmatprep.subr.bf16.mxu0 %v1476
    %2225 = vmatpush1.bf16.msra.mxu0 %v1475
    %2226 = vmatprep.subr.bf16.mxu0 %v1480
    %2227 = vmatpush1.bf16.msra.mxu0 %v1479
    %2228 = vmatprep.subr.bf16.mxu0 %v1484
    %2229 = vmatpush1.bf16.msra.mxu0 %v1483
    %2230 = vmatprep.subr.bf16.mxu0 %v1488
    %2231 = vmatpush1.bf16.msra.mxu0 %v1487
    %2232 = vmatprep.subr.bf16.mxu0 %v1492
    %2233 = vmatpush1.bf16.msra.mxu0 %v1491
    %2234 = vmatprep.subr.bf16.mxu0 %v1496
    %2235 = vmatpush1.bf16.msra.mxu0 %v1495
    %2236 = vmatprep.mubr.bf16.mxu0 %v774
    %2237 = vmatmul.mubr.bf16.gmra.mrb[0].mxu0 %v773
    %v2238 = vpop.f32.mrb[0].mxu0
    %v2239 = vadd.f32 %v2046, %v2238
    %v2240 = vpop.f32.mrb[0].mxu0
    %v2241 = vadd.f32 %v2048, %v2240
    %v2242 = vpop.f32.mrb[0].mxu0
    %v2243 = vadd.f32 %v2050, %v2242
    %v2244 = vpop.f32.mrb[0].mxu0
    %v2245 = vadd.f32 %v2052, %v2244
    %2246 = vmatprep.mubr.bf16.mxu0 %v778
    %2247 = vmatmul.mubr.bf16.gmra.mrb[0].mxu0 %v777
    %v2248 = vpop.f32.mrb[0].mxu0
    %v2249 = vadd.f32 %v2056, %v2248
    %v2250 = vpop.f32.mrb[0].mxu0
    %v2251 = vadd.f32 %v2058, %v2250
    %v2252 = vpop.f32.mrb[0].mxu0
    %v2253 = vadd.f32 %v2060, %v2252
    %v2254 = vpop.f32.mrb[0].mxu0
    %v2255 = vadd.f32 %v2062, %v2254
    %2256 = vmatprep.mubr.bf16.mxu0 %v782
    %2257 = vmatmul.mubr.bf16.gmra.mrb[0].mxu0 %v781
    %v2258 = vpop.f32.mrb[0].mxu0
    %v2259 = vadd.f32 %v2066, %v2258
    %v2260 = vpop.f32.mrb[0].mxu0
    %v2261 = vadd.f32 %v2068, %v2260
    %v2262 = vpop.f32.mrb[0].mxu0
    %v2263 = vadd.f32 %v2070, %v2262
    %v2264 = vpop.f32.mrb[0].mxu0
    %v2265 = vadd.f32 %v2072, %v2264
    %2266 = vmatprep.mubr.bf16.mxu0 %v786
    %2267 = vmatmul.mubr.bf16.gmra.mrb[0].mxu0 %v785
    %v2268 = vpop.f32.mrb[0].mxu0
    %v2269 = vadd.f32 %v2076, %v2268
    %v2270 = vpop.f32.mrb[0].mxu0
    %v2271 = vadd.f32 %v2078, %v2270
    %v2272 = vpop.f32.mrb[0].mxu0
    %v2273 = vadd.f32 %v2080, %v2272
    %v2274 = vpop.f32.mrb[0].mxu0
    %v2275 = vadd.f32 %v2082, %v2274
    %2276 = vmatprep.mubr.bf16.mxu0 %v790
    %2277 = vmatmul.mubr.bf16.gmra.mrb[0].mxu0 %v789
    %v2278 = vpop.f32.mrb[0].mxu0
    %v2279 = vadd.f32 %v2086, %v2278
    %v2280 = vpop.f32.mrb[0].mxu0
    %v2281 = vadd.f32 %v2088, %v2280
    %v2282 = vpop.f32.mrb[0].mxu0
    %v2283 = vadd.f32 %v2090, %v2282
    %v2284 = vpop.f32.mrb[0].mxu0
    %v2285 = vadd.f32 %v2092, %v2284
    %2286 = vmatprep.mubr.bf16.mxu0 %v794
    %2287 = vmatmul.mubr.bf16.gmra.mrb[0].mxu0 %v793
    %v2288 = vpop.f32.mrb[0].mxu0
    %v2289 = vadd.f32 %v2096, %v2288
    %v2290 = vpop.f32.mrb[0].mxu0
    %v2291 = vadd.f32 %v2098, %v2290
    %v2292 = vpop.f32.mrb[0].mxu0
    %v2293 = vadd.f32 %v2100, %v2292
    %v2294 = vpop.f32.mrb[0].mxu0
    %v2295 = vadd.f32 %v2102, %v2294
    %2296 = vmatprep.mubr.bf16.mxu0 %v798
    %2297 = vmatmul.mubr.bf16.gmra.mrb[0].mxu0 %v797
    %v2298 = vpop.f32.mrb[0].mxu0
    %v2299 = vadd.f32 %v2106, %v2298
    %v2300 = vpop.f32.mrb[0].mxu0
    %v2301 = vadd.f32 %v2108, %v2300
    %v2302 = vpop.f32.mrb[0].mxu0
    %v2303 = vadd.f32 %v2110, %v2302
    %v2304 = vpop.f32.mrb[0].mxu0
    %v2305 = vadd.f32 %v2112, %v2304
    %2306 = vmatprep.mubr.bf16.mxu0 %v802
    %2307 = vmatmul.mubr.bf16.gmra.mrb[0].mxu0 %v801
    %v2308 = vpop.f32.mrb[0].mxu0
    %v2309 = vadd.f32 %v2116, %v2308
    %v2310 = vpop.f32.mrb[0].mxu0
    %v2311 = vadd.f32 %v2118, %v2310
    %v2312 = vpop.f32.mrb[0].mxu0
    %v2313 = vadd.f32 %v2120, %v2312
    %v2314 = vpop.f32.mrb[0].mxu0
    %v2315 = vadd.f32 %v2122, %v2314
    %2316 = vmatprep.mubr.bf16.mxu0 %v806
    %2317 = vmatmul.mubr.bf16.gmra.mrb[0].mxu0 %v805
    %v2318 = vpop.f32.mrb[0].mxu0
    %v2319 = vadd.f32 %v2126, %v2318
    %v2320 = vpop.f32.mrb[0].mxu0
    %v2321 = vadd.f32 %v2128, %v2320
    %v2322 = vpop.f32.mrb[0].mxu0
    %v2323 = vadd.f32 %v2130, %v2322
    %v2324 = vpop.f32.mrb[0].mxu0
    %v2325 = vadd.f32 %v2132, %v2324
    %2326 = vmatprep.mubr.bf16.mxu0 %v810
    %2327 = vmatmul.mubr.bf16.gmra.mrb[0].mxu0 %v809
    %v2328 = vpop.f32.mrb[0].mxu0
    %v2329 = vadd.f32 %v2136, %v2328
    %v2330 = vpop.f32.mrb[0].mxu0
    %v2331 = vadd.f32 %v2138, %v2330
    %v2332 = vpop.f32.mrb[0].mxu0
    %v2333 = vadd.f32 %v2140, %v2332
    %v2334 = vpop.f32.mrb[0].mxu0
    %v2335 = vadd.f32 %v2142, %v2334
    %2336 = vmatprep.mubr.bf16.mxu0 %v814
    %2337 = vmatmul.mubr.bf16.gmra.mrb[0].mxu0 %v813
    %v2338 = vpop.f32.mrb[0].mxu0
    %v2339 = vadd.f32 %v2146, %v2338
    %v2340 = vpop.f32.mrb[0].mxu0
    %v2341 = vadd.f32 %v2148, %v2340
    %v2342 = vpop.f32.mrb[0].mxu0
    %v2343 = vadd.f32 %v2150, %v2342
    %v2344 = vpop.f32.mrb[0].mxu0
    %v2345 = vadd.f32 %v2152, %v2344
    %2346 = vmatprep.mubr.bf16.mxu0 %v818
    %2347 = vmatmul.mubr.bf16.gmra.mrb[0].mxu0 %v817
    %v2348 = vpop.f32.mrb[0].mxu0
    %v2349 = vadd.f32 %v2156, %v2348
    %v2350 = vpop.f32.mrb[0].mxu0
    %v2351 = vadd.f32 %v2158, %v2350
    %v2352 = vpop.f32.mrb[0].mxu0
    %v2353 = vadd.f32 %v2160, %v2352
    %v2354 = vpop.f32.mrb[0].mxu0
    %v2355 = vadd.f32 %v2162, %v2354
    %2356 = vmatprep.mubr.bf16.mxu0 %v822
    %2357 = vmatmul.mubr.bf16.gmra.mrb[0].mxu0 %v821
    %v2358 = vpop.f32.mrb[0].mxu0
    %v2359 = vadd.f32 %v2166, %v2358
    %v2360 = vpop.f32.mrb[0].mxu0
    %v2361 = vadd.f32 %v2168, %v2360
    %v2362 = vpop.f32.mrb[0].mxu0
    %v2363 = vadd.f32 %v2170, %v2362
    %v2364 = vpop.f32.mrb[0].mxu0
    %v2365 = vadd.f32 %v2172, %v2364
    %2366 = vmatprep.mubr.bf16.mxu0 %v826
    %2367 = vmatmul.mubr.bf16.gmra.mrb[0].mxu0 %v825
    %v2368 = vpop.f32.mrb[0].mxu0
    %v2369 = vadd.f32 %v2176, %v2368
    %v2370 = vpop.f32.mrb[0].mxu0
    %v2371 = vadd.f32 %v2178, %v2370
    %v2372 = vpop.f32.mrb[0].mxu0
    %v2373 = vadd.f32 %v2180, %v2372
    %v2374 = vpop.f32.mrb[0].mxu0
    %v2375 = vadd.f32 %v2182, %v2374
    %2376 = vmatprep.mubr.bf16.mxu0 %v830
    %2377 = vmatmul.mubr.bf16.gmra.mrb[0].mxu0 %v829
    %v2378 = vpop.f32.mrb[0].mxu0
    %v2379 = vadd.f32 %v2186, %v2378
    %v2380 = vpop.f32.mrb[0].mxu0
    %v2381 = vadd.f32 %v2188, %v2380
    %v2382 = vpop.f32.mrb[0].mxu0
    %v2383 = vadd.f32 %v2190, %v2382
    %v2384 = vpop.f32.mrb[0].mxu0
    %v2385 = vadd.f32 %v2192, %v2384
    %2386 = vmatprep.mubr.bf16.mxu0 %v834
    %2387 = vmatmul.mubr.bf16.gmra.mrb[0].mxu0 %v833
    %v2388 = vpop.f32.mrb[0].mxu0
    %v2389 = vadd.f32 %v2196, %v2388
    %v2390 = vpop.f32.mrb[0].mxu0
    %v2391 = vadd.f32 %v2198, %v2390
    %v2392 = vpop.f32.mrb[0].mxu0
    %v2393 = vadd.f32 %v2200, %v2392
    %v2394 = vpop.f32.mrb[0].mxu0
    %v2395 = vadd.f32 %v2202, %v2394
    %2396 = vdwg.mxu0
    %v2397 = vmax.f32 %v1853, 0.0
    %v2398 = vmax.f32 %v1855, 0.0
    %v2399 = vmax.f32 %v2239, 0.0
    %v2400 = vmax.f32 %v2241, 0.0
    %v2401 = vmax.f32 %v1857, 0.0
    %v2402 = vmax.f32 %v1859, 0.0
    %v2403 = vmax.f32 %v2243, 0.0
    %v2404 = vmax.f32 %v2245, 0.0
    %v2405 = vmax.f32 %v1863, 0.0
    %v2406 = vmax.f32 %v1865, 0.0
    %v2407 = vmax.f32 %v2249, 0.0
    %v2408 = vmax.f32 %v2251, 0.0
    %v2409 = vmax.f32 %v1867, 0.0
    %v2410 = vmax.f32 %v1869, 0.0
    %v2411 = vmax.f32 %v2253, 0.0
    %v2412 = vmax.f32 %v2255, 0.0
    %v2413 = vmax.f32 %v1873, 0.0
    %v2414 = vmax.f32 %v1875, 0.0
    %v2415 = vmax.f32 %v2259, 0.0
    %v2416 = vmax.f32 %v2261, 0.0
    %v2417 = vmax.f32 %v1877, 0.0
    %v2418 = vmax.f32 %v1879, 0.0
    %v2419 = vmax.f32 %v2263, 0.0
    %v2420 = vmax.f32 %v2265, 0.0
    %v2421 = vmax.f32 %v1883, 0.0
    %v2422 = vmax.f32 %v1885, 0.0
    %v2423 = vmax.f32 %v2269, 0.0
    %v2424 = vmax.f32 %v2271, 0.0
    %v2425 = vmax.f32 %v1887, 0.0
    %v2426 = vmax.f32 %v1889, 0.0
    %v2427 = vmax.f32 %v2273, 0.0
    %v2428 = vmax.f32 %v2275, 0.0
    %v2429 = vmax.f32 %v1893, 0.0
    %v2430 = vmax.f32 %v1895, 0.0
    %v2431 = vmax.f32 %v2279, 0.0
    %v2432 = vmax.f32 %v2281, 0.0
    %v2433 = vmax.f32 %v1897, 0.0
    %v2434 = vmax.f32 %v1899, 0.0
    %v2435 = vmax.f32 %v2283, 0.0
    %v2436 = vmax.f32 %v2285, 0.0
    %v2437 = vmax.f32 %v1903, 0.0
    %v2438 = vmax.f32 %v1905, 0.0
    %v2439 = vmax.f32 %v2289, 0.0
    %v2440 = vmax.f32 %v2291, 0.0
    %v2441 = vmax.f32 %v1907, 0.0
    %v2442 = vmax.f32 %v1909, 0.0
    %v2443 = vmax.f32 %v2293, 0.0
    %v2444 = vmax.f32 %v2295, 0.0
    %v2445 = vmax.f32 %v1913, 0.0
    %v2446 = vmax.f32 %v1915, 0.0
    %v2447 = vmax.f32 %v2299, 0.0
    %v2448 = vmax.f32 %v2301, 0.0
    %v2449 = vmax.f32 %v1917, 0.0
    %v2450 = vmax.f32 %v1919, 0.0
    %v2451 = vmax.f32 %v2303, 0.0
    %v2452 = vmax.f32 %v2305, 0.0
    %v2453 = vmax.f32 %v1923, 0.0
    %v2454 = vmax.f32 %v1925, 0.0
    %v2455 = vmax.f32 %v2309, 0.0
    %v2456 = vmax.f32 %v2311, 0.0
    %v2457 = vmax.f32 %v1927, 0.0
    %v2458 = vmax.f32 %v1929, 0.0
    %v2459 = vmax.f32 %v2313, 0.0
    %v2460 = vmax.f32 %v2315, 0.0
    %v2461 = vmax.f32 %v1933, 0.0
    %v2462 = vmax.f32 %v1935, 0.0
    %v2463 = vmax.f32 %v2319, 0.0
    %v2464 = vmax.f32 %v2321, 0.0
    %v2465 = vmax.f32 %v1937, 0.0
    %v2466 = vmax.f32 %v1939, 0.0
    %v2467 = vmax.f32 %v2323, 0.0
    %v2468 = vmax.f32 %v2325, 0.0
    %v2469 = vmax.f32 %v1943, 0.0
    %v2470 = vmax.f32 %v1945, 0.0
    %v2471 = vmax.f32 %v2329, 0.0
    %v2472 = vmax.f32 %v2331, 0.0
    %v2473 = vmax.f32 %v1947, 0.0
    %v2474 = vmax.f32 %v1949, 0.0
    %v2475 = vmax.f32 %v2333, 0.0
    %v2476 = vmax.f32 %v2335, 0.0
    %v2477 = vmax.f32 %v1953, 0.0
    %v2478 = vmax.f32 %v1955, 0.0
    %v2479 = vmax.f32 %v2339, 0.0
    %v2480 = vmax.f32 %v2341, 0.0
    %v2481 = vmax.f32 %v1957, 0.0
    %v2482 = vmax.f32 %v1959, 0.0
    %v2483 = vmax.f32 %v2343, 0.0
    %v2484 = vmax.f32 %v2345, 0.0
    %v2485 = vmax.f32 %v1963, 0.0
    %v2486 = vmax.f32 %v1965, 0.0
    %v2487 = vmax.f32 %v2349, 0.0
    %v2488 = vmax.f32 %v2351, 0.0
    %v2489 = vmax.f32 %v1967, 0.0
    %v2490 = vmax.f32 %v1969, 0.0
    %v2491 = vmax.f32 %v2353, 0.0
    %v2492 = vmax.f32 %v2355, 0.0
    %v2493 = vmax.f32 %v1973, 0.0
    %v2494 = vmax.f32 %v1975, 0.0
    %v2495 = vmax.f32 %v2359, 0.0
    %v2496 = vmax.f32 %v2361, 0.0
    %v2497 = vmax.f32 %v1977, 0.0
    %v2498 = vmax.f32 %v1979, 0.0
    %v2499 = vmax.f32 %v2363, 0.0
    %v2500 = vmax.f32 %v2365, 0.0
    %v2501 = vmax.f32 %v1983, 0.0
    %v2502 = vmax.f32 %v1985, 0.0
    %v2503 = vmax.f32 %v2369, 0.0
    %v2504 = vmax.f32 %v2371, 0.0
    %v2505 = vmax.f32 %v1987, 0.0
    %v2506 = vmax.f32 %v1989, 0.0
    %v2507 = vmax.f32 %v2373, 0.0
    %v2508 = vmax.f32 %v2375, 0.0
    %v2509 = vmax.f32 %v1993, 0.0
    %v2510 = vmax.f32 %v1995, 0.0
    %v2511 = vmax.f32 %v2379, 0.0
    %v2512 = vmax.f32 %v2381, 0.0
    %v2513 = vmax.f32 %v1997, 0.0
    %v2514 = vmax.f32 %v1999, 0.0
    %v2515 = vmax.f32 %v2383, 0.0
    %v2516 = vmax.f32 %v2385, 0.0
    %v2517 = vmax.f32 %v2003, 0.0
    %v2518 = vmax.f32 %v2005, 0.0
    %v2519 = vmax.f32 %v2389, 0.0
    %v2520 = vmax.f32 %v2391, 0.0
    %v2521 = vmax.f32 %v2007, 0.0
    %v2522 = vmax.f32 %v2009, 0.0
    %v2523 = vmax.f32 %v2393, 0.0
    %v2524 = vmax.f32 %v2395, 0.0
    %v2525 = vpack.c.bf16 %v2401, %v2397
    %v2526 = vpack.c.bf16 %v2402, %v2398
    %v2527 = vpack.c.bf16 %v2403, %v2399
    %v2528 = vpack.c.bf16 %v2404, %v2400
    %v2529 = vpack.c.bf16 %v2409, %v2405
    %v2530 = vpack.c.bf16 %v2410, %v2406
    %v2531 = vpack.c.bf16 %v2411, %v2407
    %v2532 = vpack.c.bf16 %v2412, %v2408
    %v2533 = vpack.c.bf16 %v2417, %v2413
    %v2534 = vpack.c.bf16 %v2418, %v2414
    %v2535 = vpack.c.bf16 %v2419, %v2415
    %v2536 = vpack.c.bf16 %v2420, %v2416
    %v2537 = vpack.c.bf16 %v2425, %v2421
    %v2538 = vpack.c.bf16 %v2426, %v2422
    %v2539 = vpack.c.bf16 %v2427, %v2423
    %v2540 = vpack.c.bf16 %v2428, %v2424
    %v2541 = vpack.c.bf16 %v2433, %v2429
    %v2542 = vpack.c.bf16 %v2434, %v2430
    %v2543 = vpack.c.bf16 %v2435, %v2431
    %v2544 = vpack.c.bf16 %v2436, %v2432
    %v2545 = vpack.c.bf16 %v2441, %v2437
    %v2546 = vpack.c.bf16 %v2442, %v2438
    %v2547 = vpack.c.bf16 %v2443, %v2439
    %v2548 = vpack.c.bf16 %v2444, %v2440
    %v2549 = vpack.c.bf16 %v2449, %v2445
    %v2550 = vpack.c.bf16 %v2450, %v2446
    %v2551 = vpack.c.bf16 %v2451, %v2447
    %v2552 = vpack.c.bf16 %v2452, %v2448
    %v2553 = vpack.c.bf16 %v2457, %v2453
    %v2554 = vpack.c.bf16 %v2458, %v2454
    %v2555 = vpack.c.bf16 %v2459, %v2455
    %v2556 = vpack.c.bf16 %v2460, %v2456
    %v2557 = vpack.c.bf16 %v2465, %v2461
    %v2558 = vpack.c.bf16 %v2466, %v2462
    %v2559 = vpack.c.bf16 %v2467, %v2463
    %v2560 = vpack.c.bf16 %v2468, %v2464
    %v2561 = vpack.c.bf16 %v2473, %v2469
    %v2562 = vpack.c.bf16 %v2474, %v2470
    %v2563 = vpack.c.bf16 %v2475, %v2471
    %v2564 = vpack.c.bf16 %v2476, %v2472
    %v2565 = vpack.c.bf16 %v2481, %v2477
    %v2566 = vpack.c.bf16 %v2482, %v2478
    %v2567 = vpack.c.bf16 %v2483, %v2479
    %v2568 = vpack.c.bf16 %v2484, %v2480
    %v2569 = vpack.c.bf16 %v2489, %v2485
    %v2570 = vpack.c.bf16 %v2490, %v2486
    %v2571 = vpack.c.bf16 %v2491, %v2487
    %v2572 = vpack.c.bf16 %v2492, %v2488
    %v2573 = vpack.c.bf16 %v2497, %v2493
    %v2574 = vpack.c.bf16 %v2498, %v2494
    %v2575 = vpack.c.bf16 %v2499, %v2495
    %v2576 = vpack.c.bf16 %v2500, %v2496
    %v2577 = vpack.c.bf16 %v2505, %v2501
    %v2578 = vpack.c.bf16 %v2506, %v2502
    %v2579 = vpack.c.bf16 %v2507, %v2503
    %v2580 = vpack.c.bf16 %v2508, %v2504
    %v2581 = vpack.c.bf16 %v2513, %v2509
    %v2582 = vpack.c.bf16 %v2514, %v2510
    %v2583 = vpack.c.bf16 %v2515, %v2511
    %v2584 = vpack.c.bf16 %v2516, %v2512
    %v2585 = vpack.c.bf16 %v2521, %v2517
    %v2586 = vpack.c.bf16 %v2522, %v2518
    %v2587 = vpack.c.bf16 %v2523, %v2519
    %v2588 = vpack.c.bf16 %v2524, %v2520
    %v2589 = vld [vmem:[%s5] sm:$0xf]
    %v2590 = vld [vmem:[%s5 + $0x4] sm:$0xf]
    %v2591 = vld [vmem:[%s5 + $0x8] sm:$0xf]
    %v2592 = vld [vmem:[%s5 + $0xc] sm:$0xf]
    %v2593 = vld [vmem:[%s5 + $0x10] sm:$0xf]
    %v2594 = vld [vmem:[%s5 + $0x14] sm:$0xf]
    %v2595 = vld [vmem:[%s5 + $0x18] sm:$0xf]
    %v2596 = vld [vmem:[%s5 + $0x1c] sm:$0xf]
    %v2597 = vld [vmem:[%s5 + $0x20] sm:$0xf]
    %v2598 = vld [vmem:[%s5 + $0x24] sm:$0xf]
    %v2599 = vld [vmem:[%s5 + $0x28] sm:$0xf]
    %v2600 = vld [vmem:[%s5 + $0x2c] sm:$0xf]
    %v2601 = vld [vmem:[%s5 + $0x30] sm:$0xf]
    %v2602 = vld [vmem:[%s5 + $0x34] sm:$0xf]
    %v2603 = vld [vmem:[%s5 + $0x38] sm:$0xf]
    %v2604 = vld [vmem:[%s5 + $0x3c] sm:$0xf]
    %v2605 = vld [vmem:[%s5 + $0x40] sm:$0xf]
    %v2606 = vld [vmem:[%s5 + $0x44] sm:$0xf]
    %v2607 = vld [vmem:[%s5 + $0x48] sm:$0xf]
    %v2608 = vld [vmem:[%s5 + $0x4c] sm:$0xf]
    %v2609 = vld [vmem:[%s5 + $0x50] sm:$0xf]
    %v2610 = vld [vmem:[%s5 + $0x54] sm:$0xf]
    %v2611 = vld [vmem:[%s5 + $0x58] sm:$0xf]
    %v2612 = vld [vmem:[%s5 + $0x5c] sm:$0xf]
    %v2613 = vld [vmem:[%s5 + $0x60] sm:$0xf]
    %v2614 = vld [vmem:[%s5 + $0x64] sm:$0xf]
    %v2615 = vld [vmem:[%s5 + $0x68] sm:$0xf]
    %v2616 = vld [vmem:[%s5 + $0x6c] sm:$0xf]
    %v2617 = vld [vmem:[%s5 + $0x70] sm:$0xf]
    %v2618 = vld [vmem:[%s5 + $0x74] sm:$0xf]
    %v2619 = vld [vmem:[%s5 + $0x78] sm:$0xf]
    %v2620 = vld [vmem:[%s5 + $0x7c] sm:$0xf]
    %v2621 = vld [vmem:[%s5 + $0x80] sm:$0xf]
    %v2622 = vld [vmem:[%s5 + $0x84] sm:$0xf]
    %v2623 = vld [vmem:[%s5 + $0x88] sm:$0xf]
    %v2624 = vld [vmem:[%s5 + $0x8c] sm:$0xf]
    %v2625 = vld [vmem:[%s5 + $0x90] sm:$0xf]
    %v2626 = vld [vmem:[%s5 + $0x94] sm:$0xf]
    %v2627 = vld [vmem:[%s5 + $0x98] sm:$0xf]
    %v2628 = vld [vmem:[%s5 + $0x9c] sm:$0xf]
    %v2629 = vld [vmem:[%s5 + $0xa0] sm:$0xf]
    %v2630 = vld [vmem:[%s5 + $0xa4] sm:$0xf]
    %v2631 = vld [vmem:[%s5 + $0xa8] sm:$0xf]
    %v2632 = vld [vmem:[%s5 + $0xac] sm:$0xf]
    %v2633 = vld [vmem:[%s5 + $0xb0] sm:$0xf]
    %v2634 = vld [vmem:[%s5 + $0xb4] sm:$0xf]
    %v2635 = vld [vmem:[%s5 + $0xb8] sm:$0xf]
    %v2636 = vld [vmem:[%s5 + $0xbc] sm:$0xf]
    %v2637 = vld [vmem:[%s5 + $0xc0] sm:$0xf]
    %v2638 = vld [vmem:[%s5 + $0xc4] sm:$0xf]
    %v2639 = vld [vmem:[%s5 + $0xc8] sm:$0xf]
    %v2640 = vld [vmem:[%s5 + $0xcc] sm:$0xf]
    %v2641 = vld [vmem:[%s5 + $0xd0] sm:$0xf]
    %v2642 = vld [vmem:[%s5 + $0xd4] sm:$0xf]
    %v2643 = vld [vmem:[%s5 + $0xd8] sm:$0xf]
    %v2644 = vld [vmem:[%s5 + $0xdc] sm:$0xf]
    %v2645 = vld [vmem:[%s5 + $0xe0] sm:$0xf]
    %v2646 = vld [vmem:[%s5 + $0xe4] sm:$0xf]
    %v2647 = vld [vmem:[%s5 + $0xe8] sm:$0xf]
    %v2648 = vld [vmem:[%s5 + $0xec] sm:$0xf]
    %v2649 = vld [vmem:[%s5 + $0xf0] sm:$0xf]
    %v2650 = vld [vmem:[%s5 + $0xf4] sm:$0xf]
    %v2651 = vld [vmem:[%s5 + $0xf8] sm:$0xf]
    %v2652 = vld [vmem:[%s5 + $0xfc] sm:$0xf]
    %v2653 = vld [vmem:[%s6] sm:$0x1]
    %v2655 = vlaneseq
    %v2656 = vshrl.u32 %v2655, 7
    %v2657 = vsub.s32 0, %v2656
    %v2658 = vrot.slane %v2653, %v2657
    %v2724 = vunpack.c.l.b16 %v2589
    %v2725 = vunpack.c.l.b16 %v2590
    %v2726 = vunpack.c.l.b16 %v2591
    %v2727 = vunpack.c.l.b16 %v2592
    %v2728 = vunpack.c.l.b16 %v2593
    %v2729 = vunpack.c.l.b16 %v2594
    %v2730 = vunpack.c.l.b16 %v2595
    %v2731 = vunpack.c.l.b16 %v2596
    %v2732 = vunpack.c.l.b16 %v2597
    %v2733 = vunpack.c.l.b16 %v2598
    %v2734 = vunpack.c.l.b16 %v2599
    %v2735 = vunpack.c.l.b16 %v2600
    %v2736 = vunpack.c.l.b16 %v2601
    %v2737 = vunpack.c.l.b16 %v2602
    %v2738 = vunpack.c.l.b16 %v2603
    %v2739 = vunpack.c.l.b16 %v2604
    %v2740 = vunpack.c.l.b16 %v2605
    %v2741 = vunpack.c.l.b16 %v2606
    %v2742 = vunpack.c.l.b16 %v2607
    %v2743 = vunpack.c.l.b16 %v2608
    %v2744 = vunpack.c.l.b16 %v2609
    %v2745 = vunpack.c.l.b16 %v2610
    %v2746 = vunpack.c.l.b16 %v2611
    %v2747 = vunpack.c.l.b16 %v2612
    %v2748 = vunpack.c.l.b16 %v2613
    %v2749 = vunpack.c.l.b16 %v2614
    %v2750 = vunpack.c.l.b16 %v2615
    %v2751 = vunpack.c.l.b16 %v2616
    %v2752 = vunpack.c.l.b16 %v2617
    %v2753 = vunpack.c.l.b16 %v2618
    %v2754 = vunpack.c.l.b16 %v2619
    %v2755 = vunpack.c.l.b16 %v2620
    %v2756 = vunpack.c.l.b16 %v2621
    %v2757 = vunpack.c.l.b16 %v2622
    %v2758 = vunpack.c.l.b16 %v2623
    %v2759 = vunpack.c.l.b16 %v2624
    %v2760 = vunpack.c.l.b16 %v2625
    %v2761 = vunpack.c.l.b16 %v2626
    %v2762 = vunpack.c.l.b16 %v2627
    %v2763 = vunpack.c.l.b16 %v2628
    %v2764 = vunpack.c.l.b16 %v2629
    %v2765 = vunpack.c.l.b16 %v2630
    %v2766 = vunpack.c.l.b16 %v2631
    %v2767 = vunpack.c.l.b16 %v2632
    %v2768 = vunpack.c.l.b16 %v2633
    %v2769 = vunpack.c.l.b16 %v2634
    %v2770 = vunpack.c.l.b16 %v2635
    %v2771 = vunpack.c.l.b16 %v2636
    %v2772 = vunpack.c.l.b16 %v2637
    %v2773 = vunpack.c.l.b16 %v2638
    %v2774 = vunpack.c.l.b16 %v2639
    %v2775 = vunpack.c.l.b16 %v2640
    %v2776 = vunpack.c.l.b16 %v2641
    %v2777 = vunpack.c.l.b16 %v2642
    %v2778 = vunpack.c.l.b16 %v2643
    %v2779 = vunpack.c.l.b16 %v2644
    %v2780 = vunpack.c.l.b16 %v2645
    %v2781 = vunpack.c.l.b16 %v2646
    %v2782 = vunpack.c.l.b16 %v2647
    %v2783 = vunpack.c.l.b16 %v2648
    %v2784 = vunpack.c.l.b16 %v2649
    %v2785 = vunpack.c.l.b16 %v2650
    %v2786 = vunpack.c.l.b16 %v2651
    %v2787 = vunpack.c.l.b16 %v2652
    %v2788 = vpack.c.b16 %v2725, %v2724
    %v2789 = vpack.c.b16 %v2727, %v2726
    %v2790 = vpack.c.b16 %v2729, %v2728
    %v2791 = vpack.c.b16 %v2731, %v2730
    %v2792 = vpack.c.b16 %v2733, %v2732
    %v2793 = vpack.c.b16 %v2735, %v2734
    %v2794 = vpack.c.b16 %v2737, %v2736
    %v2795 = vpack.c.b16 %v2739, %v2738
    %v2796 = vpack.c.b16 %v2741, %v2740
    %v2797 = vpack.c.b16 %v2743, %v2742
    %v2798 = vpack.c.b16 %v2745, %v2744
    %v2799 = vpack.c.b16 %v2747, %v2746
    %v2800 = vpack.c.b16 %v2749, %v2748
    %v2801 = vpack.c.b16 %v2751, %v2750
    %v2802 = vpack.c.b16 %v2753, %v2752
    %v2803 = vpack.c.b16 %v2755, %v2754
    %v2804 = vpack.c.b16 %v2757, %v2756
    %v2805 = vpack.c.b16 %v2759, %v2758
    %v2806 = vpack.c.b16 %v2761, %v2760
    %v2807 = vpack.c.b16 %v2763, %v2762
    %v2808 = vpack.c.b16 %v2765, %v2764
    %v2809 = vpack.c.b16 %v2767, %v2766
    %v2810 = vpack.c.b16 %v2769, %v2768
    %v2811 = vpack.c.b16 %v2771, %v2770
    %v2812 = vpack.c.b16 %v2773, %v2772
    %v2813 = vpack.c.b16 %v2775, %v2774
    %v2814 = vpack.c.b16 %v2777, %v2776
    %v2815 = vpack.c.b16 %v2779, %v2778
    %v2816 = vpack.c.b16 %v2781, %v2780
    %v2817 = vpack.c.b16 %v2783, %v2782
    %v2818 = vpack.c.b16 %v2785, %v2784
    %v2819 = vpack.c.b16 %v2787, %v2786
    %2852 = vmatprep.subr.bf16.mxu0 0
    %2853 = vmatpush1.bf16.msra.mxu0 %v2788
    %2854 = vmatprep.subr.bf16.mxu0 0
    %2855 = vmatpush1.bf16.msra.mxu0 %v2789
    %2856 = vmatprep.subr.bf16.mxu0 0
    %2857 = vmatpush1.bf16.msra.mxu0 %v2790
    %2858 = vmatprep.subr.bf16.mxu0 0
    %2859 = vmatpush1.bf16.msra.mxu0 %v2791
    %2860 = vmatprep.subr.bf16.mxu0 0
    %2861 = vmatpush1.bf16.msra.mxu0 %v2792
    %2862 = vmatprep.subr.bf16.mxu0 0
    %2863 = vmatpush1.bf16.msra.mxu0 %v2793
    %2864 = vmatprep.subr.bf16.mxu0 0
    %2865 = vmatpush1.bf16.msra.mxu0 %v2794
    %2866 = vmatprep.subr.bf16.mxu0 0
    %2867 = vmatpush1.bf16.msra.mxu0 %v2795
    %2868 = vmatprep.subr.bf16.mxu0 0
    %2869 = vmatpush1.bf16.msra.mxu0 %v2796
    %2870 = vmatprep.subr.bf16.mxu0 0
    %2871 = vmatpush1.bf16.msra.mxu0 %v2797
    %2872 = vmatprep.subr.bf16.mxu0 0
    %2873 = vmatpush1.bf16.msra.mxu0 %v2798
    %2874 = vmatprep.subr.bf16.mxu0 0
    %2875 = vmatpush1.bf16.msra.mxu0 %v2799
    %2876 = vmatprep.subr.bf16.mxu0 0
    %2877 = vmatpush1.bf16.msra.mxu0 %v2800
    %2878 = vmatprep.subr.bf16.mxu0 0
    %2879 = vmatpush1.bf16.msra.mxu0 %v2801
    %2880 = vmatprep.subr.bf16.mxu0 0
    %2881 = vmatpush1.bf16.msra.mxu0 %v2802
    %2882 = vmatprep.subr.bf16.mxu0 0
    %2883 = vmatpush1.bf16.msra.mxu0 %v2803
    %2884 = vmatprep.mubr.bf16.mxu0 %v2526
    %2885 = vmatmul.mubr.bf16.gmra.mrb[0].mxu0 %v2525
    %v2886 = vpop.f32.mrb[0].mxu0
    %v2887 = vadd.f32 %v2658, %v2886
    %v2888 = vpop.f32.mrb[0].mxu0
    %v2889 = vpop.f32.mrb[0].mxu0
    %v2890 = vadd.f32 %v2658, %v2889
    %v2891 = vpop.f32.mrb[0].mxu0
    %2892 = vmatprep.mubr.bf16.mxu0 %v2530
    %2893 = vmatmul.mubr.bf16.gmra.mrb[0].mxu0 %v2529
    %v2894 = vpop.f32.mrb[0].mxu0
    %v2895 = vadd.f32 %v2658, %v2894
    %v2896 = vpop.f32.mrb[0].mxu0
    %v2897 = vpop.f32.mrb[0].mxu0
    %v2898 = vadd.f32 %v2658, %v2897
    %v2899 = vpop.f32.mrb[0].mxu0
    %2900 = vmatprep.mubr.bf16.mxu0 %v2534
    %2901 = vmatmul.mubr.bf16.gmra.mrb[0].mxu0 %v2533
    %v2902 = vpop.f32.mrb[0].mxu0
    %v2903 = vadd.f32 %v2658, %v2902
    %v2904 = vpop.f32.mrb[0].mxu0
    %v2905 = vpop.f32.mrb[0].mxu0
    %v2906 = vadd.f32 %v2658, %v2905
    %v2907 = vpop.f32.mrb[0].mxu0
    %2908 = vmatprep.mubr.bf16.mxu0 %v2538
    %2909 = vmatmul.mubr.bf16.gmra.mrb[0].mxu0 %v2537
    %v2910 = vpop.f32.mrb[0].mxu0
    %v2911 = vadd.f32 %v2658, %v2910
    %v2912 = vpop.f32.mrb[0].mxu0
    %v2913 = vpop.f32.mrb[0].mxu0
    %v2914 = vadd.f32 %v2658, %v2913
    %v2915 = vpop.f32.mrb[0].mxu0
    %2916 = vmatprep.mubr.bf16.mxu0 %v2542
    %2917 = vmatmul.mubr.bf16.gmra.mrb[0].mxu0 %v2541
    %v2918 = vpop.f32.mrb[0].mxu0
    %v2919 = vadd.f32 %v2658, %v2918
    %v2920 = vpop.f32.mrb[0].mxu0
    %v2921 = vpop.f32.mrb[0].mxu0
    %v2922 = vadd.f32 %v2658, %v2921
    %v2923 = vpop.f32.mrb[0].mxu0
    %2924 = vmatprep.mubr.bf16.mxu0 %v2546
    %2925 = vmatmul.mubr.bf16.gmra.mrb[0].mxu0 %v2545
    %v2926 = vpop.f32.mrb[0].mxu0
    %v2927 = vadd.f32 %v2658, %v2926
    %v2928 = vpop.f32.mrb[0].mxu0
    %v2929 = vpop.f32.mrb[0].mxu0
    %v2930 = vadd.f32 %v2658, %v2929
    %v2931 = vpop.f32.mrb[0].mxu0
    %2932 = vmatprep.mubr.bf16.mxu0 %v2550
    %2933 = vmatmul.mubr.bf16.gmra.mrb[0].mxu0 %v2549
    %v2934 = vpop.f32.mrb[0].mxu0
    %v2935 = vadd.f32 %v2658, %v2934
    %v2936 = vpop.f32.mrb[0].mxu0
    %v2937 = vpop.f32.mrb[0].mxu0
    %v2938 = vadd.f32 %v2658, %v2937
    %v2939 = vpop.f32.mrb[0].mxu0
    %2940 = vmatprep.mubr.bf16.mxu0 %v2554
    %2941 = vmatmul.mubr.bf16.gmra.mrb[0].mxu0 %v2553
    %v2942 = vpop.f32.mrb[0].mxu0
    %v2943 = vadd.f32 %v2658, %v2942
    %v2944 = vpop.f32.mrb[0].mxu0
    %v2945 = vpop.f32.mrb[0].mxu0
    %v2946 = vadd.f32 %v2658, %v2945
    %v2947 = vpop.f32.mrb[0].mxu0
    %2948 = vmatprep.mubr.bf16.mxu0 %v2558
    %2949 = vmatmul.mubr.bf16.gmra.mrb[0].mxu0 %v2557
    %v2950 = vpop.f32.mrb[0].mxu0
    %v2951 = vadd.f32 %v2658, %v2950
    %v2952 = vpop.f32.mrb[0].mxu0
    %v2953 = vpop.f32.mrb[0].mxu0
    %v2954 = vadd.f32 %v2658, %v2953
    %v2955 = vpop.f32.mrb[0].mxu0
    %2956 = vmatprep.mubr.bf16.mxu0 %v2562
    %2957 = vmatmul.mubr.bf16.gmra.mrb[0].mxu0 %v2561
    %v2958 = vpop.f32.mrb[0].mxu0
    %v2959 = vadd.f32 %v2658, %v2958
    %v2960 = vpop.f32.mrb[0].mxu0
    %v2961 = vpop.f32.mrb[0].mxu0
    %v2962 = vadd.f32 %v2658, %v2961
    %v2963 = vpop.f32.mrb[0].mxu0
    %2964 = vmatprep.mubr.bf16.mxu0 %v2566
    %2965 = vmatmul.mubr.bf16.gmra.mrb[0].mxu0 %v2565
    %v2966 = vpop.f32.mrb[0].mxu0
    %v2967 = vadd.f32 %v2658, %v2966
    %v2968 = vpop.f32.mrb[0].mxu0
    %v2969 = vpop.f32.mrb[0].mxu0
    %v2970 = vadd.f32 %v2658, %v2969
    %v2971 = vpop.f32.mrb[0].mxu0
    %2972 = vmatprep.mubr.bf16.mxu0 %v2570
    %2973 = vmatmul.mubr.bf16.gmra.mrb[0].mxu0 %v2569
    %v2974 = vpop.f32.mrb[0].mxu0
    %v2975 = vadd.f32 %v2658, %v2974
    %v2976 = vpop.f32.mrb[0].mxu0
    %v2977 = vpop.f32.mrb[0].mxu0
    %v2978 = vadd.f32 %v2658, %v2977
    %v2979 = vpop.f32.mrb[0].mxu0
    %2980 = vmatprep.mubr.bf16.mxu0 %v2574
    %2981 = vmatmul.mubr.bf16.gmra.mrb[0].mxu0 %v2573
    %v2982 = vpop.f32.mrb[0].mxu0
    %v2983 = vadd.f32 %v2658, %v2982
    %v2984 = vpop.f32.mrb[0].mxu0
    %v2985 = vpop.f32.mrb[0].mxu0
    %v2986 = vadd.f32 %v2658, %v2985
    %v2987 = vpop.f32.mrb[0].mxu0
    %2988 = vmatprep.mubr.bf16.mxu0 %v2578
    %2989 = vmatmul.mubr.bf16.gmra.mrb[0].mxu0 %v2577
    %v2990 = vpop.f32.mrb[0].mxu0
    %v2991 = vadd.f32 %v2658, %v2990
    %v2992 = vpop.f32.mrb[0].mxu0
    %v2993 = vpop.f32.mrb[0].mxu0
    %v2994 = vadd.f32 %v2658, %v2993
    %v2995 = vpop.f32.mrb[0].mxu0
    %2996 = vmatprep.mubr.bf16.mxu0 %v2582
    %2997 = vmatmul.mubr.bf16.gmra.mrb[0].mxu0 %v2581
    %v2998 = vpop.f32.mrb[0].mxu0
    %v2999 = vadd.f32 %v2658, %v2998
    %v3000 = vpop.f32.mrb[0].mxu0
    %v3001 = vpop.f32.mrb[0].mxu0
    %v3002 = vadd.f32 %v2658, %v3001
    %v3003 = vpop.f32.mrb[0].mxu0
    %3004 = vmatprep.mubr.bf16.mxu0 %v2586
    %3005 = vmatmul.mubr.bf16.gmra.mrb[0].mxu0 %v2585
    %v3006 = vpop.f32.mrb[0].mxu0
    %v3007 = vadd.f32 %v2658, %v3006
    %v3008 = vpop.f32.mrb[0].mxu0
    %v3009 = vpop.f32.mrb[0].mxu0
    %v3010 = vadd.f32 %v2658, %v3009
    %v3011 = vpop.f32.mrb[0].mxu0
    %3012 = vdwg.mxu0
    %3013 = vmatprep.subr.bf16.mxu0 0
    %3014 = vmatpush1.bf16.msra.mxu0 %v2804
    %3015 = vmatprep.subr.bf16.mxu0 0
    %3016 = vmatpush1.bf16.msra.mxu0 %v2805
    %3017 = vmatprep.subr.bf16.mxu0 0
    %3018 = vmatpush1.bf16.msra.mxu0 %v2806
    %3019 = vmatprep.subr.bf16.mxu0 0
    %3020 = vmatpush1.bf16.msra.mxu0 %v2807
    %3021 = vmatprep.subr.bf16.mxu0 0
    %3022 = vmatpush1.bf16.msra.mxu0 %v2808
    %3023 = vmatprep.subr.bf16.mxu0 0
    %3024 = vmatpush1.bf16.msra.mxu0 %v2809
    %3025 = vmatprep.subr.bf16.mxu0 0
    %3026 = vmatpush1.bf16.msra.mxu0 %v2810
    %3027 = vmatprep.subr.bf16.mxu0 0
    %3028 = vmatpush1.bf16.msra.mxu0 %v2811
    %3029 = vmatprep.subr.bf16.mxu0 0
    %3030 = vmatpush1.bf16.msra.mxu0 %v2812
    %3031 = vmatprep.subr.bf16.mxu0 0
    %3032 = vmatpush1.bf16.msra.mxu0 %v2813
    %3033 = vmatprep.subr.bf16.mxu0 0
    %3034 = vmatpush1.bf16.msra.mxu0 %v2814
    %3035 = vmatprep.subr.bf16.mxu0 0
    %3036 = vmatpush1.bf16.msra.mxu0 %v2815
    %3037 = vmatprep.subr.bf16.mxu0 0
    %3038 = vmatpush1.bf16.msra.mxu0 %v2816
    %3039 = vmatprep.subr.bf16.mxu0 0
    %3040 = vmatpush1.bf16.msra.mxu0 %v2817
    %3041 = vmatprep.subr.bf16.mxu0 0
    %3042 = vmatpush1.bf16.msra.mxu0 %v2818
    %3043 = vmatprep.subr.bf16.mxu0 0
    %3044 = vmatpush1.bf16.msra.mxu0 %v2819
    %3045 = vmatprep.mubr.bf16.mxu0 %v2528
    %3046 = vmatmul.mubr.bf16.gmra.mrb[0].mxu0 %v2527
    %v3047 = vpop.f32.mrb[0].mxu0
    %v3048 = vadd.f32 %v2887, %v3047
    %v3049 = vpop.f32.mrb[0].mxu0
    %v3050 = vpop.f32.mrb[0].mxu0
    %v3051 = vadd.f32 %v2890, %v3050
    %v3052 = vpop.f32.mrb[0].mxu0
    %3053 = vmatprep.mubr.bf16.mxu0 %v2532
    %3054 = vmatmul.mubr.bf16.gmra.mrb[0].mxu0 %v2531
    %v3055 = vpop.f32.mrb[0].mxu0
    %v3056 = vadd.f32 %v2895, %v3055
    %v3057 = vpop.f32.mrb[0].mxu0
    %v3058 = vpop.f32.mrb[0].mxu0
    %v3059 = vadd.f32 %v2898, %v3058
    %v3060 = vpop.f32.mrb[0].mxu0
    %3061 = vmatprep.mubr.bf16.mxu0 %v2536
    %3062 = vmatmul.mubr.bf16.gmra.mrb[0].mxu0 %v2535
    %v3063 = vpop.f32.mrb[0].mxu0
    %v3064 = vadd.f32 %v2903, %v3063
    %v3065 = vpop.f32.mrb[0].mxu0
    %v3066 = vpop.f32.mrb[0].mxu0
    %v3067 = vadd.f32 %v2906, %v3066
    %v3068 = vpop.f32.mrb[0].mxu0
    %3069 = vmatprep.mubr.bf16.mxu0 %v2540
    %3070 = vmatmul.mubr.bf16.gmra.mrb[0].mxu0 %v2539
    %v3071 = vpop.f32.mrb[0].mxu0
    %v3072 = vadd.f32 %v2911, %v3071
    %v3073 = vpop.f32.mrb[0].mxu0
    %v3074 = vpop.f32.mrb[0].mxu0
    %v3075 = vadd.f32 %v2914, %v3074
    %v3076 = vpop.f32.mrb[0].mxu0
    %3077 = vmatprep.mubr.bf16.mxu0 %v2544
    %3078 = vmatmul.mubr.bf16.gmra.mrb[0].mxu0 %v2543
    %v3079 = vpop.f32.mrb[0].mxu0
    %v3080 = vadd.f32 %v2919, %v3079
    %v3081 = vpop.f32.mrb[0].mxu0
    %v3082 = vpop.f32.mrb[0].mxu0
    %v3083 = vadd.f32 %v2922, %v3082
    %v3084 = vpop.f32.mrb[0].mxu0
    %3085 = vmatprep.mubr.bf16.mxu0 %v2548
    %3086 = vmatmul.mubr.bf16.gmra.mrb[0].mxu0 %v2547
    %v3087 = vpop.f32.mrb[0].mxu0
    %v3088 = vadd.f32 %v2927, %v3087
    %v3089 = vpop.f32.mrb[0].mxu0
    %v3090 = vpop.f32.mrb[0].mxu0
    %v3091 = vadd.f32 %v2930, %v3090
    %v3092 = vpop.f32.mrb[0].mxu0
    %3093 = vmatprep.mubr.bf16.mxu0 %v2552
    %3094 = vmatmul.mubr.bf16.gmra.mrb[0].mxu0 %v2551
    %v3095 = vpop.f32.mrb[0].mxu0
    %v3096 = vadd.f32 %v2935, %v3095
    %v3097 = vpop.f32.mrb[0].mxu0
    %v3098 = vpop.f32.mrb[0].mxu0
    %v3099 = vadd.f32 %v2938, %v3098
    %v3100 = vpop.f32.mrb[0].mxu0
    %3101 = vmatprep.mubr.bf16.mxu0 %v2556
    %3102 = vmatmul.mubr.bf16.gmra.mrb[0].mxu0 %v2555
    %v3103 = vpop.f32.mrb[0].mxu0
    %v3104 = vadd.f32 %v2943, %v3103
    %v3105 = vpop.f32.mrb[0].mxu0
    %v3106 = vpop.f32.mrb[0].mxu0
    %v3107 = vadd.f32 %v2946, %v3106
    %v3108 = vpop.f32.mrb[0].mxu0
    %3109 = vmatprep.mubr.bf16.mxu0 %v2560
    %3110 = vmatmul.mubr.bf16.gmra.mrb[0].mxu0 %v2559
    %v3111 = vpop.f32.mrb[0].mxu0
    %v3112 = vadd.f32 %v2951, %v3111
    %v3113 = vpop.f32.mrb[0].mxu0
    %v3114 = vpop.f32.mrb[0].mxu0
    %v3115 = vadd.f32 %v2954, %v3114
    %v3116 = vpop.f32.mrb[0].mxu0
    %3117 = vmatprep.mubr.bf16.mxu0 %v2564
    %3118 = vmatmul.mubr.bf16.gmra.mrb[0].mxu0 %v2563
    %v3119 = vpop.f32.mrb[0].mxu0
    %v3120 = vadd.f32 %v2959, %v3119
    %v3121 = vpop.f32.mrb[0].mxu0
    %v3122 = vpop.f32.mrb[0].mxu0
    %v3123 = vadd.f32 %v2962, %v3122
    %v3124 = vpop.f32.mrb[0].mxu0
    %3125 = vmatprep.mubr.bf16.mxu0 %v2568
    %3126 = vmatmul.mubr.bf16.gmra.mrb[0].mxu0 %v2567
    %v3127 = vpop.f32.mrb[0].mxu0
    %v3128 = vadd.f32 %v2967, %v3127
    %v3129 = vpop.f32.mrb[0].mxu0
    %v3130 = vpop.f32.mrb[0].mxu0
    %v3131 = vadd.f32 %v2970, %v3130
    %v3132 = vpop.f32.mrb[0].mxu0
    %3133 = vmatprep.mubr.bf16.mxu0 %v2572
    %3134 = vmatmul.mubr.bf16.gmra.mrb[0].mxu0 %v2571
    %v3135 = vpop.f32.mrb[0].mxu0
    %v3136 = vadd.f32 %v2975, %v3135
    %v3137 = vpop.f32.mrb[0].mxu0
    %v3138 = vpop.f32.mrb[0].mxu0
    %v3139 = vadd.f32 %v2978, %v3138
    %v3140 = vpop.f32.mrb[0].mxu0
    %3141 = vmatprep.mubr.bf16.mxu0 %v2576
    %3142 = vmatmul.mubr.bf16.gmra.mrb[0].mxu0 %v2575
    %v3143 = vpop.f32.mrb[0].mxu0
    %v3144 = vadd.f32 %v2983, %v3143
    %v3145 = vpop.f32.mrb[0].mxu0
    %v3146 = vpop.f32.mrb[0].mxu0
    %v3147 = vadd.f32 %v2986, %v3146
    %v3148 = vpop.f32.mrb[0].mxu0
    %3149 = vmatprep.mubr.bf16.mxu0 %v2580
    %3150 = vmatmul.mubr.bf16.gmra.mrb[0].mxu0 %v2579
    %v3151 = vpop.f32.mrb[0].mxu0
    %v3152 = vadd.f32 %v2991, %v3151
    %v3153 = vpop.f32.mrb[0].mxu0
    %v3154 = vpop.f32.mrb[0].mxu0
    %v3155 = vadd.f32 %v2994, %v3154
    %v3156 = vpop.f32.mrb[0].mxu0
    %3157 = vmatprep.mubr.bf16.mxu0 %v2584
    %3158 = vmatmul.mubr.bf16.gmra.mrb[0].mxu0 %v2583
    %v3159 = vpop.f32.mrb[0].mxu0
    %v3160 = vadd.f32 %v2999, %v3159
    %v3161 = vpop.f32.mrb[0].mxu0
    %v3162 = vpop.f32.mrb[0].mxu0
    %v3163 = vadd.f32 %v3002, %v3162
    %v3164 = vpop.f32.mrb[0].mxu0
    %3165 = vmatprep.mubr.bf16.mxu0 %v2588
    %3166 = vmatmul.mubr.bf16.gmra.mrb[0].mxu0 %v2587
    %v3167 = vpop.f32.mrb[0].mxu0
    %v3168 = vadd.f32 %v3007, %v3167
    %v3169 = vpop.f32.mrb[0].mxu0
    %v3170 = vpop.f32.mrb[0].mxu0
    %v3171 = vadd.f32 %v3010, %v3170
    %v3172 = vpop.f32.mrb[0].mxu0
    %3173 = vdwg.mxu0
    %3174 = vst [vmem:[#allocation5] sm:$0xff] %v3048
    %3175 = vst [vmem:[#allocation5 + $0x8] sm:$0xff] %v3051
    %3176 = vst [vmem:[#allocation5 + $0x10] sm:$0xff] %v3056
    %3177 = vst [vmem:[#allocation5 + $0x18] sm:$0xff] %v3059
    %3178 = vst [vmem:[#allocation5 + $0x20] sm:$0xff] %v3064
    %3179 = vst [vmem:[#allocation5 + $0x28] sm:$0xff] %v3067
    %3180 = vst [vmem:[#allocation5 + $0x30] sm:$0xff] %v3072
    %3181 = vst [vmem:[#allocation5 + $0x38] sm:$0xff] %v3075
    %3182 = vst [vmem:[#allocation5 + $0x40] sm:$0xff] %v3080
    %3183 = vst [vmem:[#allocation5 + $0x48] sm:$0xff] %v3083
    %3184 = vst [vmem:[#allocation5 + $0x50] sm:$0xff] %v3088
    %3185 = vst [vmem:[#allocation5 + $0x58] sm:$0xff] %v3091
    %3186 = vst [vmem:[#allocation5 + $0x60] sm:$0xff] %v3096
    %3187 = vst [vmem:[#allocation5 + $0x68] sm:$0xff] %v3099
    %3188 = vst [vmem:[#allocation5 + $0x70] sm:$0xff] %v3104
    %3189 = vst [vmem:[#allocation5 + $0x78] sm:$0xff] %v3107
    %3190 = vst [vmem:[#allocation5 + $0x80] sm:$0xff] %v3112
    %3191 = vst [vmem:[#allocation5 + $0x88] sm:$0xff] %v3115
    %3192 = vst [vmem:[#allocation5 + $0x90] sm:$0xff] %v3120
    %3193 = vst [vmem:[#allocation5 + $0x98] sm:$0xff] %v3123
    %3194 = vst [vmem:[#allocation5 + $0xa0] sm:$0xff] %v3128
    %3195 = vst [vmem:[#allocation5 + $0xa8] sm:$0xff] %v3131
    %3196 = vst [vmem:[#allocation5 + $0xb0] sm:$0xff] %v3136
    %3197 = vst [vmem:[#allocation5 + $0xb8] sm:$0xff] %v3139
    %3198 = vst [vmem:[#allocation5 + $0xc0] sm:$0xff] %v3144
    %3199 = vst [vmem:[#allocation5 + $0xc8] sm:$0xff] %v3147
    %3200 = vst [vmem:[#allocation5 + $0xd0] sm:$0xff] %v3152
    %3201 = vst [vmem:[#allocation5 + $0xd8] sm:$0xff] %v3155
    %3202 = vst [vmem:[#allocation5 + $0xe0] sm:$0xff] %v3160
    %3203 = vst [vmem:[#allocation5 + $0xe8] sm:$0xff] %v3163
    %3204 = vst [vmem:[#allocation5 + $0xf0] sm:$0xff] %v3168
    %3205 = vst [vmem:[#allocation5 + $0xf8] sm:$0xff] %v3171
    // Predicated region
    $region34: #{tpu_custom_call.1} parent=1 // pred_check
      _
    $region35: #{tpu_custom_call.1} parent=1 // pred_check_branch
      %3207 = sbr.rel (0) target = $region37
    $region36: #{tpu_custom_call.1} parent=1 // pred_region
      %s3209 = ssub.s32 4096, 4096
      %3210 = vsyncadd [#allocation4], %s3209
      %s3211 = sshll.u32 [#allocation5], 4
      %s3212 = int_to_ptr.vmem [resolvable:$true] %s3211
      %3217 = dma.vmem_to_hbm [thread:$0]  %s3212, 4096, %s7, [#allocation4], 128, 128, 8
    $region37: #{tpu_custom_call.1} parent=1 // pred_fallthru
      _
    // Predicated region
    $region38: #{tpu_custom_call.1} parent=1 // pred_check
      _
    $region39: #{tpu_custom_call.1} parent=1 // pred_check_branch
      %3219 = sbr.rel (0) target = $region41
    $region40: #{tpu_custom_call.1} parent=1 // pred_region
      %3220 = dma.done [#allocation4], 4096
    $region41: #{tpu_custom_call.1} parent=1 // pred_fallthru
      _
    %3221 = vsyncpa [#allocation3], 1
    %3222 = vsyncpa [#allocation4], 1

</llo_original>
